<compile_context>
chip_gen: v5e
topology: v5e:2x2
jax: 0.10.0
libtpu: 0.0.40
codegen_flags: <defaults>
</compile_context>

<pallas_src>
import functools

import numpy as np
import jax
import jax.numpy as jnp
from jax.experimental import pallas as pl
from jax.experimental.pallas import tpu as pltpu

CHANNELS_NUM = 8
BN_EPS = 1e-5
CP = 128          # lane-padded channel width (all layers)


# ----------------------------------------------------------------------------
# Fused kernel: whole forward pass for ONE batch sample per grid step.
# ----------------------------------------------------------------------------
def _fused_ticnn_kernel(x_ref, w_ref, s_ref, b_ref, sel1_ref, sel2_ref,
                        fcw_ref, fcb_ref, o_ref, stage_ref):
    """x_ref:   (1, L, Cin)        raw input sample (channels-last)
       w_ref:   (5, 3*CP, CP)      im2col conv weights, zero padded to 128 lanes
       s_ref:   (5, CP)            folded BN scale (zero in padded channels)
       b_ref:   (5, CP)            folded BN bias  (zero in padded channels)
       sel*_ref:(3, LoutP, LinP)   constant 0/1 maxpool row-selection matrices
       fcw_ref: (CP, CP)           padded FC weight
       fcb_ref: (1, CP)            padded FC bias
       o_ref:   (1, 1, CP)         padded logits for this sample
       stage_ref: VMEM (L+2, CP)   zero-padded input staging buffer
    """
    L, Cin = x_ref.shape[1], x_ref.shape[2]

    def shift_dn(a):                      # out[j] = a[j-1], out[0] = 0
        z = jnp.zeros((1, a.shape[1]), jnp.float32)
        return jnp.concatenate([z, a[:-1, :]], axis=0)

    def shift_up(a):                      # out[j] = a[j+1], out[-1] = 0
        z = jnp.zeros((1, a.shape[1]), jnp.float32)
        return jnp.concatenate([a[1:, :], z], axis=0)

    def conv_bn_relu(a, layer):
        # a: (Lp, CP), rows 0 and Lp-1 are zero padding. One im2col matmul
        # with K = 3*CP (MXU-friendly), then folded-BN affine + ReLU.
        # (Optionally cast xs / w to bf16 on v6e/v7x; kept f32 here.)
        Lp = a.shape[0]
        xs = jnp.concatenate([shift_dn(a), a, shift_up(a)], axis=1)  # (Lp, 3*CP)
        y = jnp.dot(xs, w_ref[layer], preferred_element_type=jnp.float32)
        y = y * s_ref[layer:layer + 1, :] + b_ref[layer:layer + 1, :]
        y = jnp.maximum(y, 0.0)
        # Re-zero the two padding rows (bias would otherwise leak into them).
        r = jax.lax.broadcasted_iota(jnp.int32, (Lp, CP), 0)
        return jnp.where((r >= 1) & (r <= Lp - 2), y, 0.0)

    def maxpool3(a, sel_ref):
        # MaxPool1d(kernel=3, stride=3, padding=1) via constant row selection:
        # window i of output row i+1 covers input rows 3i, 3i+1, 3i+2.
        # Activations are >= 0, so the zero pad rows act like -inf padding.
        m = jnp.dot(sel_ref[0], a, preferred_element_type=jnp.float32)
        m = jnp.maximum(m, jnp.dot(sel_ref[1], a,
                                   preferred_element_type=jnp.float32))
        m = jnp.maximum(m, jnp.dot(sel_ref[2], a,
                                   preferred_element_type=jnp.float32))
        return m                                   # (LoutP, CP), pad rows zero

    # In-kernel padding: stage the (L, Cin) sample into a zeroed (L+2, CP)
    # buffer (length pad rows + channel pad lanes), no jnp.pad in the wrapper.
    stage_ref[...] = jnp.zeros_like(stage_ref)
    stage_ref[1:L + 1, 0:Cin] = x_ref[0]
    a = stage_ref[...]

    a = conv_bn_relu(a, 0)            # 8  -> 16   (+ bn_16   + ReLU)
    a = conv_bn_relu(a, 1)            # 16 -> 32   (+ bn_32   + ReLU)
    a = conv_bn_relu(a, 2)            # 32 -> 64   (+ bn_64_3 + ReLU)
    a = maxpool3(a, sel1_ref)         # L  -> L1
    a = conv_bn_relu(a, 3)            # 64 -> 64   (shared conv, bn_64_4)
    a = maxpool3(a, sel2_ref)         # L1 -> L2
    a = conv_bn_relu(a, 4)            # 64 -> 64   (shared conv, bn_64_5)

    # AdaptiveAvgPool1d(1): pad rows are zero, so sum / n_valid == mean.
    n_valid = a.shape[0] - 2
    pooled = jnp.sum(a, axis=0, keepdims=True) * (1.0 / n_valid)   # (1, CP)
    logits = jnp.dot(pooled, fcw_ref[...],
                     preferred_element_type=jnp.float32) + fcb_ref[...]
    o_ref[0] = logits


# ----------------------------------------------------------------------------
# Parameter folding (done once, outside the hot path)
# ----------------------------------------------------------------------------
def fold_params(params):
    """Fold conv bias + BN into scale/bias, build 128-lane-padded im2col
    weights stacked as (5, 3*CP, CP), and pad the FC weight/bias."""
    def fold_conv(conv, bn):
        w, cb = conv                       # w: (3, Cin, Cout)
        gamma, beta, mean, var = bn
        K, Cin, Cout = w.shape
        wp = jnp.zeros((K * CP, CP), jnp.float32)
        for k in range(K):
            wp = wp.at[k * CP:k * CP + Cin, :Cout].set(w[k])
        scale = gamma / jnp.sqrt(var + BN_EPS)
        bias = (cb - mean) * scale + beta
        sp = jnp.zeros((CP,), jnp.float32).at[:Cout].set(scale)
        bp = jnp.zeros((CP,), jnp.float32).at[:Cout].set(bias)
        return wp, sp, bp

    layers = [
        fold_conv(params["c_8_16"], params["bn16"]),
        fold_conv(params["c_16_32"], params["bn32"]),
        fold_conv(params["c_32_64"], params["bn64_3"]),
        fold_conv(params["c_64_64"], params["bn64_4"]),   # shared conv weights
        fold_conv(params["c_64_64"], params["bn64_5"]),   # reused again
    ]
    fc_w, fc_b = params["fc_w"], params["fc_b"]
    nclass = fc_w.shape[1]
    fcw = jnp.zeros((CP, CP), jnp.float32).at[:fc_w.shape[0], :nclass].set(fc_w)
    fcb = jnp.zeros((1, CP), jnp.float32).at[0, :nclass].set(fc_b)
    return {
        "w": jnp.stack([l[0] for l in layers]),     # (5, 3*CP, CP)
        "s": jnp.stack([l[1] for l in layers]),     # (5, CP)
        "b": jnp.stack([l[2] for l in layers]),     # (5, CP)
        "fcw": fcw, "fcb": fcb, "nclass": nclass,
    }


def _pool_len(lin):
    # PyTorch MaxPool1d(kernel=3, stride=3, padding=1) output length.
    return (lin + 2 - 3) // 3 + 1


def _pool_selectors(lin):
    """Constant 0/1 matrices (3, lout+2, lin+2): sel[k, i+1, 3i+k] = 1."""
    lout = _pool_len(lin)
    sel = np.zeros((3, lout + 2, lin + 2), np.float32)
    for i in range(lout):
        for k in range(3):
            sel[k, i + 1, 3 * i + k] = 1.0
    return sel, lout


# ----------------------------------------------------------------------------
# Forward (single fused pallas_call)
# ----------------------------------------------------------------------------
def ticnn_at_forward(x_ncl, fp):
    """x_ncl: (B, 8, L) like the PyTorch module; returns (B, nclass)."""
    B, Cin, L = x_ncl.shape
    x = jnp.transpose(x_ncl, (0, 2, 1)).astype(jnp.float32)      # NCL -> NLC

    sel1_np, L1 = _pool_selectors(L)
    sel2_np, L2 = _pool_selectors(L1)
    sel1, sel2 = jnp.asarray(sel1_np), jnp.asarray(sel2_np)

    lp0, lp1, lp2 = L + 2, L1 + 2, L2 + 2
    conv_flops = 2 * (3 * CP) * CP * (3 * lp0 + lp1 + lp2)
    pool_flops = 2 * CP * 3 * (lp1 * lp0 + lp2 * lp1)
    cost = pl.CostEstimate(
        flops=int(B * (conv_flops + pool_flops + 2 * CP * CP)),
        transcendentals=0,
        bytes_accessed=int(4 * (x.size + fp["w"].size + fp["s"].size
                                + fp["b"].size + sel1.size + sel2.size
                                + fp["fcw"].size + fp["fcb"].size + B * CP)))

    out = pl.pallas_call(
        _fused_ticnn_kernel,
        out_shape=jax.ShapeDtypeStruct((B, 1, CP), jnp.float32),
        grid=(B,),
        in_specs=[
            pl.BlockSpec((1, L, Cin), lambda b: (b, 0, 0)),        # x (per sample)
            pl.BlockSpec((5, 3 * CP, CP), lambda b: (0, 0, 0)),    # conv weights
            pl.BlockSpec((5, CP), lambda b: (0, 0)),               # BN scale
            pl.BlockSpec((5, CP), lambda b: (0, 0)),               # BN bias
            pl.BlockSpec(sel1.shape, lambda b: (0, 0, 0)),         # pool1 select
            pl.BlockSpec(sel2.shape, lambda b: (0, 0, 0)),         # pool2 select
            pl.BlockSpec((CP, CP), lambda b: (0, 0)),              # FC weight
            pl.BlockSpec((1, CP), lambda b: (0, 0)),               # FC bias
        ],
        out_specs=pl.BlockSpec((1, 1, CP), lambda b: (b, 0, 0)),
        scratch_shapes=[pltpu.VMEM((L + 2, CP), jnp.float32)],
        compiler_params=pltpu.CompilerParams(
            dimension_semantics=("parallel",)),
        cost_estimate=cost,
    )(x, fp["w"], fp["s"], fp["b"], sel1, sel2, fp["fcw"], fp["fcb"])
    return out[:, 0, :fp["nclass"]]


# ----------------------------------------------------------------------------
# Pure-JAX reference (eval-mode semantics) for a correctness cross-check
# ----------------------------------------------------------------------------
def reference_forward(x_ncl, params):
    hi = jax.lax.Precision.HIGHEST

    def conv_bn_relu(x, conv, bn):                 # x: (B, Cin, L)
        w, cb = conv                               # w: (3, Cin, Cout)
        gamma, beta, mean, var = bn
        wt = jnp.transpose(w, (2, 1, 0))           # (Cout, Cin, 3)
        y = jax.lax.conv_general_dilated(
            x, wt, window_strides=(1,), padding=((1, 1),),
            dimension_numbers=("NCH", "OIH", "NCH"), precision=hi)
        y = y + cb[None, :, None]
        scale = gamma / jnp.sqrt(var + BN_EPS)
        y = (y - mean[None, :, None]) * scale[None, :, None] + beta[None, :, None]
        return jnp.maximum(y, 0.0)

    def maxpool(x):                                # (B, C, L)
        lout = _pool_len(x.shape[-1])
        xp = jnp.pad(x, ((0, 0), (0, 0), (1, 1)), constant_values=-jnp.inf)
        cols = [jnp.max(xp[:, :, 3 * i:3 * i + 3], axis=-1, keepdims=True)
                for i in range(lout)]
        return jnp.concatenate(cols, axis=-1)

    x = x_ncl.astype(jnp.float32)
    x = conv_bn_relu(x, params["c_8_16"], params["bn16"])
    x = conv_bn_relu(x, params["c_16_32"], params["bn32"])
    x = conv_bn_relu(x, params["c_32_64"], params["bn64_3"])
    x = maxpool(x)
    x = conv_bn_relu(x, params["c_64_64"], params["bn64_4"])
    x = maxpool(x)
    x = conv_bn_relu(x, params["c_64_64"], params["bn64_5"])
    pooled = jnp.mean(x, axis=-1)                  # AdaptiveAvgPool1d(1)
    return jnp.dot(pooled, params["fc_w"], precision=hi) + params["fc_b"]


# ----------------------------------------------------------------------------
# Parameter init (mirrors the PyTorch layers actually used in forward)
# ----------------------------------------------------------------------------
def init_params(key, nclass):
    keys = jax.random.split(key, 16)

    def conv(k, cin, cout):
        kw, kb = jax.random.split(k)
        bound = 1.0 / (cin * 3) ** 0.5
        w = jax.random.uniform(kw, (3, cin, cout), jnp.float32, -bound, bound)
        b = jax.random.uniform(kb, (cout,), jnp.float32, -bound, bound)
        return w, b

    def bn(k, c):
        k1, k2, k3, k4 = jax.random.split(k, 4)
        gamma = 1.0 + 0.1 * jax.random.normal(k1, (c,), jnp.float32)
        beta = 0.1 * jax.random.normal(k2, (c,), jnp.float32)
        mean = 0.1 * jax.random.normal(k3, (c,), jnp.float32)
        var = 1.0 + 0.1 * jax.random.uniform(k4, (c,), jnp.float32)
        return gamma, beta, mean, var

    kf_w, kf_b = jax.random.split(keys[15])
    fc_bound = 1.0 / (64.0 ** 0.5)
    return {
        "c_8_16": conv(keys[0], CHANNELS_NUM, 16),
        "c_16_32": conv(keys[1], 16, 32),
        "c_32_64": conv(keys[2], 32, 64),
        "c_64_64": conv(keys[3], 64, 64),      # layer_64_64, used twice
        "bn16": bn(keys[4], 16),
        "bn32": bn(keys[5], 32),
        "bn64_3": bn(keys[6], 64),
        "bn64_4": bn(keys[7], 64),
        "bn64_5": bn(keys[8], 64),
        "fc_w": jax.random.uniform(kf_w, (64, nclass), jnp.float32,
                                   -fc_bound, fc_bound),
        "fc_b": jax.random.uniform(kf_b, (nclass,), jnp.float32,
                                   -fc_bound, fc_bound),
    }


if __name__ == "__main__":
    key = jax.random.PRNGKey(0)
    kx, kp = jax.random.split(key)
    B, C, L = 2, CHANNELS_NUM, 48
    nclass = 5
    x = jax.random.normal(kx, (B, C, L), jnp.float32)
    params = init_params(kp, nclass)
    folded = fold_params(params)

    fwd = jax.jit(functools.partial(ticnn_at_forward, fp=folded))
    out = jax.block_until_ready(fwd(x))
    assert out.shape == (B, nclass), out.shape
    assert bool(jnp.all(jnp.isfinite(out)))

    ref = jax.block_until_ready(reference_forward(x, params))
    assert bool(jnp.allclose(out, ref, rtol=5e-2, atol=5e-2)), (
        "mismatch vs reference", float(jnp.max(jnp.abs(out - ref))))

    print("KERNEL_OK")
</pallas_src>

<mosaic_0001>
module attributes {stable_mosaic.version = 11 : i64} {
  func.func @_fused_ticnn_kernel(%arg0: i32, %arg1: memref<1x48x8xf32, #tpu.memory_space<vmem>>, %arg2: memref<5x384x128xf32, #tpu.memory_space<vmem>>, %arg3: memref<5x128xf32, #tpu.memory_space<vmem>>, %arg4: memref<5x128xf32, #tpu.memory_space<vmem>>, %arg5: memref<3x18x50xf32, #tpu.memory_space<vmem>>, %arg6: memref<3x8x18xf32, #tpu.memory_space<vmem>>, %arg7: memref<128x128xf32, #tpu.memory_space<vmem>>, %arg8: memref<1x128xf32, #tpu.memory_space<vmem>>, %arg9: memref<1x1x128xf32, #tpu.memory_space<vmem>>, %arg10: memref<50x128xf32, #tpu.memory_space<vmem>>) attributes {dimension_semantics = [#tpu.dimension_semantics<parallel>], iteration_bounds = array<i64: 2>, scalar_prefetch = 0 : i64, scratch_operands = 1 : i64, tpu.core_type = #tpu.core_type<tc>, window_params = [{transform_indices = @transform_0, window_bounds = array<i64: 1, 48, 8>}, {pipeline_mode = #tpu.pipeline_mode<synchronous>, transform_indices = @transform_1, window_bounds = array<i64: 5, 384, 128>}, {pipeline_mode = #tpu.pipeline_mode<synchronous>, transform_indices = @transform_2, window_bounds = array<i64: 5, 128>}, {pipeline_mode = #tpu.pipeline_mode<synchronous>, transform_indices = @transform_3, window_bounds = array<i64: 5, 128>}, {pipeline_mode = #tpu.pipeline_mode<synchronous>, transform_indices = @transform_4, window_bounds = array<i64: 3, 18, 50>}, {pipeline_mode = #tpu.pipeline_mode<synchronous>, transform_indices = @transform_5, window_bounds = array<i64: 3, 8, 18>}, {pipeline_mode = #tpu.pipeline_mode<synchronous>, transform_indices = @transform_6, window_bounds = array<i64: 128, 128>}, {pipeline_mode = #tpu.pipeline_mode<synchronous>, transform_indices = @transform_7, window_bounds = array<i64: 1, 128>}, {transform_indices = @transform_8, window_bounds = array<i64: 1, 1, 128>}]} {
    %cst = arith.constant 0.000000e+00 : f32
    %0 = vector.broadcast %cst : f32 to vector<50x128xf32>
    %c0 = arith.constant 0 : index
    %c0_0 = arith.constant 0 : index
    %1 = vector.load %arg10[%c0, %c0_0] : memref<50x128xf32, #tpu.memory_space<vmem>>, vector<50x128xf32>
    tpu.vector_store %arg10[%c0, %c0_0], %0 {strides = array<i32>} : memref<50x128xf32, #tpu.memory_space<vmem>>, vector<50x128xf32>,
    %c0_1 = arith.constant 0 : index
    %c0_2 = arith.constant 0 : index
    %c0_3 = arith.constant 0 : index
    %2 = vector.load %arg1[%c0_1, %c0_2, %c0_3] : memref<1x48x8xf32, #tpu.memory_space<vmem>>, vector<1x48x8xf32>
    %3 = vector.shape_cast %2 : vector<1x48x8xf32> to vector<48x8xf32>
    %c1 = arith.constant 1 : index
    %c0_4 = arith.constant 0 : index
    %4 = vector.load %arg10[%c1, %c0_4] : memref<50x128xf32, #tpu.memory_space<vmem>>, vector<48x8xf32>
    tpu.vector_store %arg10[%c1, %c0_4], %3 {strides = array<i32>} : memref<50x128xf32, #tpu.memory_space<vmem>>, vector<48x8xf32>,
    %c0_5 = arith.constant 0 : index
    %c0_6 = arith.constant 0 : index
    %5 = vector.load %arg10[%c0_5, %c0_6] : memref<50x128xf32, #tpu.memory_space<vmem>>, vector<50x128xf32>
    %cst_7 = arith.constant 0.000000e+00 : f32
    %6 = vector.broadcast %cst_7 : f32 to vector<1x128xf32>
    %7 = vector.extract_strided_slice %5 {offsets = [0, 0], sizes = [49, 128], strides = [1, 1]} : vector<50x128xf32> to vector<49x128xf32>
    %8 = tpu.concatenate %6, %7 in 0 : vector<1x128xf32>, vector<49x128xf32> -> vector<50x128xf32>
    %cst_8 = arith.constant 0.000000e+00 : f32
    %9 = vector.broadcast %cst_8 : f32 to vector<1x128xf32>
    %10 = vector.extract_strided_slice %5 {offsets = [1, 0], sizes = [49, 128], strides = [1, 1]} : vector<50x128xf32> to vector<49x128xf32>
    %11 = tpu.concatenate %10, %9 in 0 : vector<49x128xf32>, vector<1x128xf32> -> vector<50x128xf32>
    %12 = tpu.concatenate %8, %5, %11 in 1 : vector<50x128xf32>, vector<50x128xf32>, vector<50x128xf32> -> vector<50x384xf32>
    %c0_9 = arith.constant 0 : index
    %c0_10 = arith.constant 0 : index
    %c0_11 = arith.constant 0 : index
    %13 = vector.load %arg2[%c0_9, %c0_10, %c0_11] : memref<5x384x128xf32, #tpu.memory_space<vmem>>, vector<1x384x128xf32>
    %14 = vector.shape_cast %13 : vector<1x384x128xf32> to vector<384x128xf32>
    %cst_12 = arith.constant dense<0.000000e+00> : vector<50x128xf32>
    %15 = tpu.matmul %12, %14, %cst_12 {dimension_numbers = #tpu.dot_dimension_numbers<[1], [0], [0], [1], [0, 0, 1, 1], [], []>} : vector<50x384xf32>, vector<384x128xf32>, vector<50x128xf32> -> vector<50x128xf32>
    %c0_13 = arith.constant 0 : index
    %c0_14 = arith.constant 0 : index
    %16 = vector.load %arg3[%c0_13, %c0_14] : memref<5x128xf32, #tpu.memory_space<vmem>>, vector<1x128xf32>
    %17 = vector.broadcast %16 : vector<1x128xf32> to vector<50x128xf32>
    %18 = arith.mulf %15, %17 : vector<50x128xf32>
    %c0_15 = arith.constant 0 : index
    %c0_16 = arith.constant 0 : index
    %19 = vector.load %arg4[%c0_15, %c0_16] : memref<5x128xf32, #tpu.memory_space<vmem>>, vector<1x128xf32>
    %20 = vector.broadcast %19 : vector<1x128xf32> to vector<50x128xf32>
    %21 = arith.addf %18, %20 : vector<50x128xf32>
    %cst_17 = arith.constant 0.000000e+00 : f32
    %22 = vector.broadcast %cst_17 : f32 to vector<50x128xf32>
    %23 = arith.maximumf %21, %22 : vector<50x128xf32>
    %24 = tpu.iota {dimensions = array<i32: 0>} : vector<50x128xi32>
    %c1_i32 = arith.constant 1 : i32
    %25 = vector.broadcast %c1_i32 : i32 to vector<50x128xi32>
    %26 = arith.cmpi sge, %24, %25 : vector<50x128xi32>
    %c48_i32 = arith.constant 48 : i32
    %27 = vector.broadcast %c48_i32 : i32 to vector<50x128xi32>
    %28 = arith.cmpi sle, %24, %27 : vector<50x128xi32>
    %29 = arith.andi %26, %28 : vector<50x128xi1>
    %cst_18 = arith.constant 0.000000e+00 : f32
    %30 = vector.broadcast %cst_18 : f32 to vector<50x128xf32>
    %31 = arith.select %29, %23, %30 : vector<50x128xi1>, vector<50x128xf32>
    %cst_19 = arith.constant 0.000000e+00 : f32
    %32 = vector.broadcast %cst_19 : f32 to vector<1x128xf32>
    %33 = vector.extract_strided_slice %31 {offsets = [0, 0], sizes = [49, 128], strides = [1, 1]} : vector<50x128xf32> to vector<49x128xf32>
    %34 = tpu.concatenate %32, %33 in 0 : vector<1x128xf32>, vector<49x128xf32> -> vector<50x128xf32>
    %cst_20 = arith.constant 0.000000e+00 : f32
    %35 = vector.broadcast %cst_20 : f32 to vector<1x128xf32>
    %36 = vector.extract_strided_slice %31 {offsets = [1, 0], sizes = [49, 128], strides = [1, 1]} : vector<50x128xf32> to vector<49x128xf32>
    %37 = tpu.concatenate %36, %35 in 0 : vector<49x128xf32>, vector<1x128xf32> -> vector<50x128xf32>
    %38 = tpu.concatenate %34, %31, %37 in 1 : vector<50x128xf32>, vector<50x128xf32>, vector<50x128xf32> -> vector<50x384xf32>
    %c1_21 = arith.constant 1 : index
    %c0_22 = arith.constant 0 : index
    %c0_23 = arith.constant 0 : index
    %39 = vector.load %arg2[%c1_21, %c0_22, %c0_23] : memref<5x384x128xf32, #tpu.memory_space<vmem>>, vector<1x384x128xf32>
    %40 = vector.shape_cast %39 : vector<1x384x128xf32> to vector<384x128xf32>
    %cst_24 = arith.constant dense<0.000000e+00> : vector<50x128xf32>
    %41 = tpu.matmul %38, %40, %cst_24 {dimension_numbers = #tpu.dot_dimension_numbers<[1], [0], [0], [1], [0, 0, 1, 1], [], []>} : vector<50x384xf32>, vector<384x128xf32>, vector<50x128xf32> -> vector<50x128xf32>
    %c1_25 = arith.constant 1 : index
    %c0_26 = arith.constant 0 : index
    %42 = vector.load %arg3[%c1_25, %c0_26] : memref<5x128xf32, #tpu.memory_space<vmem>>, vector<1x128xf32>
    %43 = vector.broadcast %42 : vector<1x128xf32> to vector<50x128xf32>
    %44 = arith.mulf %41, %43 : vector<50x128xf32>
    %c1_27 = arith.constant 1 : index
    %c0_28 = arith.constant 0 : index
    %45 = vector.load %arg4[%c1_27, %c0_28] : memref<5x128xf32, #tpu.memory_space<vmem>>, vector<1x128xf32>
    %46 = vector.broadcast %45 : vector<1x128xf32> to vector<50x128xf32>
    %47 = arith.addf %44, %46 : vector<50x128xf32>
    %cst_29 = arith.constant 0.000000e+00 : f32
    %48 = vector.broadcast %cst_29 : f32 to vector<50x128xf32>
    %49 = arith.maximumf %47, %48 : vector<50x128xf32>
    %50 = tpu.iota {dimensions = array<i32: 0>} : vector<50x128xi32>
    %c1_i32_30 = arith.constant 1 : i32
    %51 = vector.broadcast %c1_i32_30 : i32 to vector<50x128xi32>
    %52 = arith.cmpi sge, %50, %51 : vector<50x128xi32>
    %c48_i32_31 = arith.constant 48 : i32
    %53 = vector.broadcast %c48_i32_31 : i32 to vector<50x128xi32>
    %54 = arith.cmpi sle, %50, %53 : vector<50x128xi32>
    %55 = arith.andi %52, %54 : vector<50x128xi1>
    %cst_32 = arith.constant 0.000000e+00 : f32
    %56 = vector.broadcast %cst_32 : f32 to vector<50x128xf32>
    %57 = arith.select %55, %49, %56 : vector<50x128xi1>, vector<50x128xf32>
    %cst_33 = arith.constant 0.000000e+00 : f32
    %58 = vector.broadcast %cst_33 : f32 to vector<1x128xf32>
    %59 = vector.extract_strided_slice %57 {offsets = [0, 0], sizes = [49, 128], strides = [1, 1]} : vector<50x128xf32> to vector<49x128xf32>
    %60 = tpu.concatenate %58, %59 in 0 : vector<1x128xf32>, vector<49x128xf32> -> vector<50x128xf32>
    %cst_34 = arith.constant 0.000000e+00 : f32
    %61 = vector.broadcast %cst_34 : f32 to vector<1x128xf32>
    %62 = vector.extract_strided_slice %57 {offsets = [1, 0], sizes = [49, 128], strides = [1, 1]} : vector<50x128xf32> to vector<49x128xf32>
    %63 = tpu.concatenate %62, %61 in 0 : vector<49x128xf32>, vector<1x128xf32> -> vector<50x128xf32>
    %64 = tpu.concatenate %60, %57, %63 in 1 : vector<50x128xf32>, vector<50x128xf32>, vector<50x128xf32> -> vector<50x384xf32>
    %c2 = arith.constant 2 : index
    %c0_35 = arith.constant 0 : index
    %c0_36 = arith.constant 0 : index
    %65 = vector.load %arg2[%c2, %c0_35, %c0_36] : memref<5x384x128xf32, #tpu.memory_space<vmem>>, vector<1x384x128xf32>
    %66 = vector.shape_cast %65 : vector<1x384x128xf32> to vector<384x128xf32>
    %cst_37 = arith.constant dense<0.000000e+00> : vector<50x128xf32>
    %67 = tpu.matmul %64, %66, %cst_37 {dimension_numbers = #tpu.dot_dimension_numbers<[1], [0], [0], [1], [0, 0, 1, 1], [], []>} : vector<50x384xf32>, vector<384x128xf32>, vector<50x128xf32> -> vector<50x128xf32>
    %c2_38 = arith.constant 2 : index
    %c0_39 = arith.constant 0 : index
    %68 = vector.load %arg3[%c2_38, %c0_39] : memref<5x128xf32, #tpu.memory_space<vmem>>, vector<1x128xf32>
    %69 = vector.broadcast %68 : vector<1x128xf32> to vector<50x128xf32>
    %70 = arith.mulf %67, %69 : vector<50x128xf32>
    %c2_40 = arith.constant 2 : index
    %c0_41 = arith.constant 0 : index
    %71 = vector.load %arg4[%c2_40, %c0_41] : memref<5x128xf32, #tpu.memory_space<vmem>>, vector<1x128xf32>
    %72 = vector.broadcast %71 : vector<1x128xf32> to vector<50x128xf32>
    %73 = arith.addf %70, %72 : vector<50x128xf32>
    %cst_42 = arith.constant 0.000000e+00 : f32
    %74 = vector.broadcast %cst_42 : f32 to vector<50x128xf32>
    %75 = arith.maximumf %73, %74 : vector<50x128xf32>
    %76 = tpu.iota {dimensions = array<i32: 0>} : vector<50x128xi32>
    %c1_i32_43 = arith.constant 1 : i32
    %77 = vector.broadcast %c1_i32_43 : i32 to vector<50x128xi32>
    %78 = arith.cmpi sge, %76, %77 : vector<50x128xi32>
    %c48_i32_44 = arith.constant 48 : i32
    %79 = vector.broadcast %c48_i32_44 : i32 to vector<50x128xi32>
    %80 = arith.cmpi sle, %76, %79 : vector<50x128xi32>
    %81 = arith.andi %78, %80 : vector<50x128xi1>
    %cst_45 = arith.constant 0.000000e+00 : f32
    %82 = vector.broadcast %cst_45 : f32 to vector<50x128xf32>
    %83 = arith.select %81, %75, %82 : vector<50x128xi1>, vector<50x128xf32>
    %c0_46 = arith.constant 0 : index
    %c0_47 = arith.constant 0 : index
    %c0_48 = arith.constant 0 : index
    %84 = vector.load %arg5[%c0_46, %c0_47, %c0_48] : memref<3x18x50xf32, #tpu.memory_space<vmem>>, vector<1x18x50xf32>
    %85 = vector.shape_cast %84 : vector<1x18x50xf32> to vector<18x50xf32>
    %cst_49 = arith.constant dense<0.000000e+00> : vector<18x128xf32>
    %86 = tpu.matmul %85, %83, %cst_49 {dimension_numbers = #tpu.dot_dimension_numbers<[1], [0], [0], [1], [0, 0, 1, 1], [], []>} : vector<18x50xf32>, vector<50x128xf32>, vector<18x128xf32> -> vector<18x128xf32>
    %c1_50 = arith.constant 1 : index
    %c0_51 = arith.constant 0 : index
    %c0_52 = arith.constant 0 : index
    %87 = vector.load %arg5[%c1_50, %c0_51, %c0_52] : memref<3x18x50xf32, #tpu.memory_space<vmem>>, vector<1x18x50xf32>
    %88 = vector.shape_cast %87 : vector<1x18x50xf32> to vector<18x50xf32>
    %cst_53 = arith.constant dense<0.000000e+00> : vector<18x128xf32>
    %89 = tpu.matmul %88, %83, %cst_53 {dimension_numbers = #tpu.dot_dimension_numbers<[1], [0], [0], [1], [0, 0, 1, 1], [], []>} : vector<18x50xf32>, vector<50x128xf32>, vector<18x128xf32> -> vector<18x128xf32>
    %90 = arith.maximumf %86, %89 : vector<18x128xf32>
    %c2_54 = arith.constant 2 : index
    %c0_55 = arith.constant 0 : index
    %c0_56 = arith.constant 0 : index
    %91 = vector.load %arg5[%c2_54, %c0_55, %c0_56] : memref<3x18x50xf32, #tpu.memory_space<vmem>>, vector<1x18x50xf32>
    %92 = vector.shape_cast %91 : vector<1x18x50xf32> to vector<18x50xf32>
    %cst_57 = arith.constant dense<0.000000e+00> : vector<18x128xf32>
    %93 = tpu.matmul %92, %83, %cst_57 {dimension_numbers = #tpu.dot_dimension_numbers<[1], [0], [0], [1], [0, 0, 1, 1], [], []>} : vector<18x50xf32>, vector<50x128xf32>, vector<18x128xf32> -> vector<18x128xf32>
    %94 = arith.maximumf %90, %93 : vector<18x128xf32>
    %cst_58 = arith.constant 0.000000e+00 : f32
    %95 = vector.broadcast %cst_58 : f32 to vector<1x128xf32>
    %96 = vector.extract_strided_slice %94 {offsets = [0, 0], sizes = [17, 128], strides = [1, 1]} : vector<18x128xf32> to vector<17x128xf32>
    %97 = tpu.concatenate %95, %96 in 0 : vector<1x128xf32>, vector<17x128xf32> -> vector<18x128xf32>
    %cst_59 = arith.constant 0.000000e+00 : f32
    %98 = vector.broadcast %cst_59 : f32 to vector<1x128xf32>
    %99 = vector.extract_strided_slice %94 {offsets = [1, 0], sizes = [17, 128], strides = [1, 1]} : vector<18x128xf32> to vector<17x128xf32>
    %100 = tpu.concatenate %99, %98 in 0 : vector<17x128xf32>, vector<1x128xf32> -> vector<18x128xf32>
    %101 = tpu.concatenate %97, %94, %100 in 1 : vector<18x128xf32>, vector<18x128xf32>, vector<18x128xf32> -> vector<18x384xf32>
    %c3 = arith.constant 3 : index
    %c0_60 = arith.constant 0 : index
    %c0_61 = arith.constant 0 : index
    %102 = vector.load %arg2[%c3, %c0_60, %c0_61] : memref<5x384x128xf32, #tpu.memory_space<vmem>>, vector<1x384x128xf32>
    %103 = vector.shape_cast %102 : vector<1x384x128xf32> to vector<384x128xf32>
    %cst_62 = arith.constant dense<0.000000e+00> : vector<18x128xf32>
    %104 = tpu.matmul %101, %103, %cst_62 {dimension_numbers = #tpu.dot_dimension_numbers<[1], [0], [0], [1], [0, 0, 1, 1], [], []>} : vector<18x384xf32>, vector<384x128xf32>, vector<18x128xf32> -> vector<18x128xf32>
    %c3_63 = arith.constant 3 : index
    %c0_64 = arith.constant 0 : index
    %105 = vector.load %arg3[%c3_63, %c0_64] : memref<5x128xf32, #tpu.memory_space<vmem>>, vector<1x128xf32>
    %106 = vector.broadcast %105 : vector<1x128xf32> to vector<18x128xf32>
    %107 = arith.mulf %104, %106 : vector<18x128xf32>
    %c3_65 = arith.constant 3 : index
    %c0_66 = arith.constant 0 : index
    %108 = vector.load %arg4[%c3_65, %c0_66] : memref<5x128xf32, #tpu.memory_space<vmem>>, vector<1x128xf32>
    %109 = vector.broadcast %108 : vector<1x128xf32> to vector<18x128xf32>
    %110 = arith.addf %107, %109 : vector<18x128xf32>
    %cst_67 = arith.constant 0.000000e+00 : f32
    %111 = vector.broadcast %cst_67 : f32 to vector<18x128xf32>
    %112 = arith.maximumf %110, %111 : vector<18x128xf32>
    %113 = tpu.iota {dimensions = array<i32: 0>} : vector<18x128xi32>
    %c1_i32_68 = arith.constant 1 : i32
    %114 = vector.broadcast %c1_i32_68 : i32 to vector<18x128xi32>
    %115 = arith.cmpi sge, %113, %114 : vector<18x128xi32>
    %c16_i32 = arith.constant 16 : i32
    %116 = vector.broadcast %c16_i32 : i32 to vector<18x128xi32>
    %117 = arith.cmpi sle, %113, %116 : vector<18x128xi32>
    %118 = arith.andi %115, %117 : vector<18x128xi1>
    %cst_69 = arith.constant 0.000000e+00 : f32
    %119 = vector.broadcast %cst_69 : f32 to vector<18x128xf32>
    %120 = arith.select %118, %112, %119 : vector<18x128xi1>, vector<18x128xf32>
    %c0_70 = arith.constant 0 : index
    %c0_71 = arith.constant 0 : index
    %c0_72 = arith.constant 0 : index
    %121 = vector.load %arg6[%c0_70, %c0_71, %c0_72] : memref<3x8x18xf32, #tpu.memory_space<vmem>>, vector<1x8x18xf32>
    %122 = vector.shape_cast %121 : vector<1x8x18xf32> to vector<8x18xf32>
    %cst_73 = arith.constant dense<0.000000e+00> : vector<8x128xf32>
    %123 = tpu.matmul %122, %120, %cst_73 {dimension_numbers = #tpu.dot_dimension_numbers<[1], [0], [0], [1], [0, 0, 1, 1], [], []>} : vector<8x18xf32>, vector<18x128xf32>, vector<8x128xf32> -> vector<8x128xf32>
    %c1_74 = arith.constant 1 : index
    %c0_75 = arith.constant 0 : index
    %c0_76 = arith.constant 0 : index
    %124 = vector.load %arg6[%c1_74, %c0_75, %c0_76] : memref<3x8x18xf32, #tpu.memory_space<vmem>>, vector<1x8x18xf32>
    %125 = vector.shape_cast %124 : vector<1x8x18xf32> to vector<8x18xf32>
    %cst_77 = arith.constant dense<0.000000e+00> : vector<8x128xf32>
    %126 = tpu.matmul %125, %120, %cst_77 {dimension_numbers = #tpu.dot_dimension_numbers<[1], [0], [0], [1], [0, 0, 1, 1], [], []>} : vector<8x18xf32>, vector<18x128xf32>, vector<8x128xf32> -> vector<8x128xf32>
    %127 = arith.maximumf %123, %126 : vector<8x128xf32>
    %c2_78 = arith.constant 2 : index
    %c0_79 = arith.constant 0 : index
    %c0_80 = arith.constant 0 : index
    %128 = vector.load %arg6[%c2_78, %c0_79, %c0_80] : memref<3x8x18xf32, #tpu.memory_space<vmem>>, vector<1x8x18xf32>
    %129 = vector.shape_cast %128 : vector<1x8x18xf32> to vector<8x18xf32>
    %cst_81 = arith.constant dense<0.000000e+00> : vector<8x128xf32>
    %130 = tpu.matmul %129, %120, %cst_81 {dimension_numbers = #tpu.dot_dimension_numbers<[1], [0], [0], [1], [0, 0, 1, 1], [], []>} : vector<8x18xf32>, vector<18x128xf32>, vector<8x128xf32> -> vector<8x128xf32>
    %131 = arith.maximumf %127, %130 : vector<8x128xf32>
    %cst_82 = arith.constant 0.000000e+00 : f32
    %132 = vector.broadcast %cst_82 : f32 to vector<1x128xf32>
    %133 = vector.extract_strided_slice %131 {offsets = [0, 0], sizes = [7, 128], strides = [1, 1]} : vector<8x128xf32> to vector<7x128xf32>
    %134 = tpu.concatenate %132, %133 in 0 : vector<1x128xf32>, vector<7x128xf32> -> vector<8x128xf32>
    %cst_83 = arith.constant 0.000000e+00 : f32
    %135 = vector.broadcast %cst_83 : f32 to vector<1x128xf32>
    %136 = vector.extract_strided_slice %131 {offsets = [1, 0], sizes = [7, 128], strides = [1, 1]} : vector<8x128xf32> to vector<7x128xf32>
    %137 = tpu.concatenate %136, %135 in 0 : vector<7x128xf32>, vector<1x128xf32> -> vector<8x128xf32>
    %138 = tpu.concatenate %134, %131, %137 in 1 : vector<8x128xf32>, vector<8x128xf32>, vector<8x128xf32> -> vector<8x384xf32>
    %c4 = arith.constant 4 : index
    %c0_84 = arith.constant 0 : index
    %c0_85 = arith.constant 0 : index
    %139 = vector.load %arg2[%c4, %c0_84, %c0_85] : memref<5x384x128xf32, #tpu.memory_space<vmem>>, vector<1x384x128xf32>
    %140 = vector.shape_cast %139 : vector<1x384x128xf32> to vector<384x128xf32>
    %cst_86 = arith.constant dense<0.000000e+00> : vector<8x128xf32>
    %141 = tpu.matmul %138, %140, %cst_86 {dimension_numbers = #tpu.dot_dimension_numbers<[1], [0], [0], [1], [0, 0, 1, 1], [], []>} : vector<8x384xf32>, vector<384x128xf32>, vector<8x128xf32> -> vector<8x128xf32>
    %c4_87 = arith.constant 4 : index
    %c0_88 = arith.constant 0 : index
    %142 = vector.load %arg3[%c4_87, %c0_88] : memref<5x128xf32, #tpu.memory_space<vmem>>, vector<1x128xf32>
    %143 = vector.broadcast %142 : vector<1x128xf32> to vector<8x128xf32>
    %144 = arith.mulf %141, %143 : vector<8x128xf32>
    %c4_89 = arith.constant 4 : index
    %c0_90 = arith.constant 0 : index
    %145 = vector.load %arg4[%c4_89, %c0_90] : memref<5x128xf32, #tpu.memory_space<vmem>>, vector<1x128xf32>
    %146 = vector.broadcast %145 : vector<1x128xf32> to vector<8x128xf32>
    %147 = arith.addf %144, %146 : vector<8x128xf32>
    %cst_91 = arith.constant 0.000000e+00 : f32
    %148 = vector.broadcast %cst_91 : f32 to vector<8x128xf32>
    %149 = arith.maximumf %147, %148 : vector<8x128xf32>
    %150 = tpu.iota {dimensions = array<i32: 0>} : vector<8x128xi32>
    %c1_i32_92 = arith.constant 1 : i32
    %151 = vector.broadcast %c1_i32_92 : i32 to vector<8x128xi32>
    %152 = arith.cmpi sge, %150, %151 : vector<8x128xi32>
    %c6_i32 = arith.constant 6 : i32
    %153 = vector.broadcast %c6_i32 : i32 to vector<8x128xi32>
    %154 = arith.cmpi sle, %150, %153 : vector<8x128xi32>
    %155 = arith.andi %152, %154 : vector<8x128xi1>
    %cst_93 = arith.constant 0.000000e+00 : f32
    %156 = vector.broadcast %cst_93 : f32 to vector<8x128xf32>
    %157 = arith.select %155, %149, %156 : vector<8x128xi1>, vector<8x128xf32>
    %cst_94 = arith.constant dense<0.000000e+00> : vector<128xf32>
    %158 = vector.multi_reduction <add>, %157, %cst_94 [0] : vector<8x128xf32> to vector<128xf32>
    %159 = vector.shape_cast %158 : vector<128xf32> to vector<1x128xf32>
    %cst_95 = arith.constant 0.166666672 : f32
    %160 = vector.broadcast %cst_95 : f32 to vector<1x128xf32>
    %161 = arith.mulf %159, %160 : vector<1x128xf32>
    %c0_96 = arith.constant 0 : index
    %c0_97 = arith.constant 0 : index
    %162 = vector.load %arg7[%c0_96, %c0_97] : memref<128x128xf32, #tpu.memory_space<vmem>>, vector<128x128xf32>
    %cst_98 = arith.constant dense<0.000000e+00> : vector<1x128xf32>
    %163 = tpu.matmul %161, %162, %cst_98 {dimension_numbers = #tpu.dot_dimension_numbers<[1], [0], [0], [1], [0, 0, 1, 1], [], []>} : vector<1x128xf32>, vector<128x128xf32>, vector<1x128xf32> -> vector<1x128xf32>
    %c0_99 = arith.constant 0 : index
    %c0_100 = arith.constant 0 : index
    %164 = vector.load %arg8[%c0_99, %c0_100] : memref<1x128xf32, #tpu.memory_space<vmem>>, vector<1x128xf32>
    %165 = arith.addf %163, %164 : vector<1x128xf32>
    %c0_101 = arith.constant 0 : index
    %c0_102 = arith.constant 0 : index
    %c0_103 = arith.constant 0 : index
    %166 = vector.load %arg9[%c0_101, %c0_102, %c0_103] : memref<1x1x128xf32, #tpu.memory_space<vmem>>, vector<1x1x128xf32>
    %167 = vector.shape_cast %166 : vector<1x1x128xf32> to vector<1x128xf32>
    %168 = vector.shape_cast %165 : vector<1x128xf32> to vector<1x1x128xf32>
    tpu.vector_store %arg9[%c0_101, %c0_102, %c0_103], %168 {strides = array<i32>} : memref<1x1x128xf32, #tpu.memory_space<vmem>>, vector<1x1x128xf32>,
    return
  }
  func.func @transform_0(%arg0: i32) -> (i32, i32, i32) {
    %c0_i32 = arith.constant 0 : i32
    %c0_i32_0 = arith.constant 0 : i32
    %c0_i32_1 = arith.constant 0 : i32
    return %arg0, %c0_i32, %c0_i32_0 : i32, i32, i32
  }
  func.func @transform_1(%arg0: i32) -> (i32, i32, i32) {
    %c0_i32 = arith.constant 0 : i32
    %c0_i32_0 = arith.constant 0 : i32
    %c0_i32_1 = arith.constant 0 : i32
    %c0_i32_2 = arith.constant 0 : i32
    return %c0_i32, %c0_i32_0, %c0_i32_1 : i32, i32, i32
  }
  func.func @transform_2(%arg0: i32) -> (i32, i32) {
    %c0_i32 = arith.constant 0 : i32
    %c0_i32_0 = arith.constant 0 : i32
    %c0_i32_1 = arith.constant 0 : i32
    return %c0_i32, %c0_i32_0 : i32, i32
  }
  func.func @transform_3(%arg0: i32) -> (i32, i32) {
    %c0_i32 = arith.constant 0 : i32
    %c0_i32_0 = arith.constant 0 : i32
    %c0_i32_1 = arith.constant 0 : i32
    return %c0_i32, %c0_i32_0 : i32, i32
  }
  func.func @transform_4(%arg0: i32) -> (i32, i32, i32) {
    %c0_i32 = arith.constant 0 : i32
    %c0_i32_0 = arith.constant 0 : i32
    %c0_i32_1 = arith.constant 0 : i32
    %c0_i32_2 = arith.constant 0 : i32
    return %c0_i32, %c0_i32_0, %c0_i32_1 : i32, i32, i32
  }
  func.func @transform_5(%arg0: i32) -> (i32, i32, i32) {
    %c0_i32 = arith.constant 0 : i32
    %c0_i32_0 = arith.constant 0 : i32
    %c0_i32_1 = arith.constant 0 : i32
    %c0_i32_2 = arith.constant 0 : i32
    return %c0_i32, %c0_i32_0, %c0_i32_1 : i32, i32, i32
  }
  func.func @transform_6(%arg0: i32) -> (i32, i32) {
    %c0_i32 = arith.constant 0 : i32
    %c0_i32_0 = arith.constant 0 : i32
    %c0_i32_1 = arith.constant 0 : i32
    return %c0_i32, %c0_i32_0 : i32, i32
  }
  func.func @transform_7(%arg0: i32) -> (i32, i32) {
    %c0_i32 = arith.constant 0 : i32
    %c0_i32_0 = arith.constant 0 : i32
    %c0_i32_1 = arith.constant 0 : i32
    return %c0_i32, %c0_i32_0 : i32, i32
  }
  func.func @transform_8(%arg0: i32) -> (i32, i32, i32) {
    %c0_i32 = arith.constant 0 : i32
    %c0_i32_0 = arith.constant 0 : i32
    %c0_i32_1 = arith.constant 0 : i32
    return %arg0, %c0_i32, %c0_i32_0 : i32, i32, i32
  }
}

</mosaic_0001>

<llo_original>
// kernel: ticnn_at_forward.1
$region0: #{ticnn_at_forward.1}
  #allocation0 [shape = 'u32[]', space=smem, size = 0x4, offset = 0x4, fixed_abs, tag = 'smem constant byte address 0x4 - core index']
  #allocation1 [shape = 'u32[72,128]{1,0:T(1,128)}', space=vmem, size = 0x9000, scoped, tag = 'internal scratch']
  #allocation2 [shape = 'f32[50,128]{1,0:T(8,128)}', space=vmem, size = 0x7000, scoped, tag = 'scratch operand']
  %s0 = inlined_call_operand.vmem [shape: f32[2,48,8], index: 0, kind: input, shape index: {}]
  %s1 = inlined_call_operand.hbm [shape: f32[5,384,128], index: 1, kind: input, shape index: {}]
  %s2 = inlined_call_operand.vmem [shape: f32[5,128], index: 2, kind: input, shape index: {}]
  %s3 = inlined_call_operand.vmem [shape: f32[5,128], index: 3, kind: input, shape index: {}]
  %s4 = inlined_call_operand.vmem [shape: f32[3,18,50], index: 4, kind: input, shape index: {}]
  %s5 = inlined_call_operand.vmem [shape: f32[3,8,18], index: 5, kind: input, shape index: {}]
  %s6 = inlined_call_operand.hbm [shape: f32[128,128], index: 6, kind: input, shape index: {}]
  %s7 = inlined_call_operand.vmem [shape: f32[1,128], index: 7, kind: input, shape index: {}]
  %s8 = inlined_call_operand.hbm [shape: f32[2,1,128], index: 8, kind: output, shape index: {}]
  %s9 = sld [smem:[#allocation0]]
  $region73: #{ticnn_at_forward.1} parent=0
    _
  %s11 = ssub.s32 1, %s9
  %s12 = scalar_select 0, %s11, %s9
  $region1: #{ticnn_at_forward.1} parent=0
    #allocation3 [shape = 'u8[983040]{0}', space=vmem, size = 0xf0000, scoped, tag = 'input window, operand 1, single buffered']
    #allocation4 [shape = 's32[2]{0}', space=sflag, size = 0x8, scoped, tag = 'scoped memory for ticnn_at_forward.1']
    #allocation5 [shape = 's32[2]{0}', space=sflag, size = 0x8, scoped, tag = 'scoped memory for ticnn_at_forward.1']
    #allocation6 [shape = 'u8[65536]{0}', space=vmem, size = 0x10000, scoped, tag = 'input window, operand 6, single buffered']
    #allocation7 [shape = 's32[1]{0}', space=sflag, size = 0x4, scoped, tag = 'scoped memory for ticnn_at_forward.1']
    #allocation8 [shape = 'u8[1024]{0}', space=vmem, size = 0x400, scoped, tag = 'output window, operand 0']
    %13 = vsyncpa [#allocation4], 0
    %14 = vsyncpa [#allocation7], 0
    %15 = vsyncpa [#allocation5], 0
    %s16 = scalar_lea.sflag [#allocation5], 1
    %17 = vsyncpa %s16, 0
    loop: start=0, step=1, limit=4
    $region2: #{ticnn_at_forward.1} parent=1 // loop_pre_header
      _
    $region3: #{ticnn_at_forward.1} parent=1 // loop_header
      %s19 = sphi 0, %s23
      %p20 = scmp.ge.s32.totalorder %s19, 4
      %s29 = sphi 0, %s31
      %s32 = sphi 0, %s29
      %s33 = sphi 0, %s32
      %s49 = sphi 0, %s33
      %s53 = sphi 0, %s53
      %s55 = sphi 0, %s53
      %s56 = sphi 0, %s55
      %s70 = sphi 0, %s56
      %s74 = sphi 0, %s74
      %s76 = sphi 0, %s74
      %s77 = sphi 0, %s76
      %s91 = sphi 0, %s77
      %s95 = sphi 0, %s95
      %s97 = sphi 0, %s95
      %s98 = sphi 0, %s97
      %s112 = sphi 0, %s98
      %s116 = sphi 0, %s116
      %s118 = sphi 0, %s116
      %s119 = sphi 0, %s118
      %s133 = sphi 0, %s119
      %s137 = sphi 0, %s137
      %s139 = sphi 0, %s137
      %s140 = sphi 0, %s139
      %s154 = sphi 0, %s140
      %s158 = sphi 0, %s158
      %s160 = sphi 0, %s158
      %s161 = sphi 0, %s160
      %s175 = sphi 0, %s161
      %s179 = sphi 0, %s179
      %s181 = sphi 0, %s179
      %s182 = sphi 0, %s181
      %s196 = sphi 0, %s182
      %s202 = sphi 0, %s204
      %s205 = sphi 0, %s202
      %s206 = sphi 0, %s205
      %s222 = sphi 0, %s206
    $region4: #{ticnn_at_forward.1} parent=1 // loop_header_branch
      %22 = sbr.rel (%p20) target = $region8
    $region5: #{ticnn_at_forward.1} parent=1 // loop_body
      %s24 = ssub.s32 %s19, 1
      %s25 = ssub.s32 %s19, 2
      %s26 = sadd.s32 %s19, 1
      %s27 = ssub.s32 %s19, %s26
      %p28 = scmp.eq.s32.totalorder %s27, 0
      %s30 = sadd.s32 %s29, 1
      %s31 = scalar_select %p28, %s29, %s30
      %p34 = pneg %p28
      %p35 = scmp.eq.s32.totalorder %s19, 1
      %p36 = por %p34, %p35
      %p37 = scmp.ne.s32.totalorder %s29, %s32
      %p38 = scmp.eq.s32.totalorder %s19, 0
      %p39 = por %p37, %p38
      %p40 = scmp.ne.s32.totalorder %s29, %s32
      %p41 = scmp.eq.s32.totalorder %s24, 1
      %p42 = por %p40, %p41
      %p43 = scmp.ne.s32.totalorder %s32, %s33
      %p44 = scmp.eq.s32.totalorder %s24, 0
      %p45 = por %p43, %p44
      %p46 = scmp.ne.s32.totalorder %s32, %s33
      %p47 = scmp.eq.s32.totalorder %s25, 1
      %p48 = por %p46, %p47
      %p50 = scmp.ne.s32.totalorder %s33, %s49
      %p51 = scmp.eq.s32.totalorder %s25, 0
      %p52 = por %p50, %p51
      %s54 = sadd.s32 %s53, 1
      %p57 = scmp.eq.s32.totalorder %s19, 1
      %p58 = scmp.ne.s32.totalorder %s53, %s55
      %p59 = scmp.eq.s32.totalorder %s19, 0
      %p60 = por %p58, %p59
      %p61 = scmp.ne.s32.totalorder %s53, %s55
      %p62 = scmp.eq.s32.totalorder %s24, 1
      %p63 = por %p61, %p62
      %p64 = scmp.ne.s32.totalorder %s55, %s56
      %p65 = scmp.eq.s32.totalorder %s24, 0
      %p66 = por %p64, %p65
      %p67 = scmp.ne.s32.totalorder %s55, %s56
      %p68 = scmp.eq.s32.totalorder %s25, 1
      %p69 = por %p67, %p68
      %p71 = scmp.ne.s32.totalorder %s56, %s70
      %p72 = scmp.eq.s32.totalorder %s25, 0
      %p73 = por %p71, %p72
      %s75 = sadd.s32 %s74, 1
      %p78 = scmp.eq.s32.totalorder %s19, 1
      %p79 = scmp.ne.s32.totalorder %s74, %s76
      %p80 = scmp.eq.s32.totalorder %s19, 0
      %p81 = por %p79, %p80
      %p82 = scmp.ne.s32.totalorder %s74, %s76
      %p83 = scmp.eq.s32.totalorder %s24, 1
      %p84 = por %p82, %p83
      %p85 = scmp.ne.s32.totalorder %s76, %s77
      %p86 = scmp.eq.s32.totalorder %s24, 0
      %p87 = por %p85, %p86
      %p88 = scmp.ne.s32.totalorder %s76, %s77
      %p89 = scmp.eq.s32.totalorder %s25, 1
      %p90 = por %p88, %p89
      %p92 = scmp.ne.s32.totalorder %s77, %s91
      %p93 = scmp.eq.s32.totalorder %s25, 0
      %p94 = por %p92, %p93
      %s96 = sadd.s32 %s95, 1
      %p99 = scmp.eq.s32.totalorder %s19, 1
      %p100 = scmp.ne.s32.totalorder %s95, %s97
      %p101 = scmp.eq.s32.totalorder %s19, 0
      %p102 = por %p100, %p101
      %p103 = scmp.ne.s32.totalorder %s95, %s97
      %p104 = scmp.eq.s32.totalorder %s24, 1
      %p105 = por %p103, %p104
      %p106 = scmp.ne.s32.totalorder %s97, %s98
      %p107 = scmp.eq.s32.totalorder %s24, 0
      %p108 = por %p106, %p107
      %p109 = scmp.ne.s32.totalorder %s97, %s98
      %p110 = scmp.eq.s32.totalorder %s25, 1
      %p111 = por %p109, %p110
      %p113 = scmp.ne.s32.totalorder %s98, %s112
      %p114 = scmp.eq.s32.totalorder %s25, 0
      %p115 = por %p113, %p114
      %s117 = sadd.s32 %s116, 1
      %p120 = scmp.eq.s32.totalorder %s19, 1
      %p121 = scmp.ne.s32.totalorder %s116, %s118
      %p122 = scmp.eq.s32.totalorder %s19, 0
      %p123 = por %p121, %p122
      %p124 = scmp.ne.s32.totalorder %s116, %s118
      %p125 = scmp.eq.s32.totalorder %s24, 1
      %p126 = por %p124, %p125
      %p127 = scmp.ne.s32.totalorder %s118, %s119
      %p128 = scmp.eq.s32.totalorder %s24, 0
      %p129 = por %p127, %p128
      %p130 = scmp.ne.s32.totalorder %s118, %s119
      %p131 = scmp.eq.s32.totalorder %s25, 1
      %p132 = por %p130, %p131
      %p134 = scmp.ne.s32.totalorder %s119, %s133
      %p135 = scmp.eq.s32.totalorder %s25, 0
      %p136 = por %p134, %p135
      %s138 = sadd.s32 %s137, 1
      %p141 = scmp.eq.s32.totalorder %s19, 1
      %p142 = scmp.ne.s32.totalorder %s137, %s139
      %p143 = scmp.eq.s32.totalorder %s19, 0
      %p144 = por %p142, %p143
      %p145 = scmp.ne.s32.totalorder %s137, %s139
      %p146 = scmp.eq.s32.totalorder %s24, 1
      %p147 = por %p145, %p146
      %p148 = scmp.ne.s32.totalorder %s139, %s140
      %p149 = scmp.eq.s32.totalorder %s24, 0
      %p150 = por %p148, %p149
      %p151 = scmp.ne.s32.totalorder %s139, %s140
      %p152 = scmp.eq.s32.totalorder %s25, 1
      %p153 = por %p151, %p152
      %p155 = scmp.ne.s32.totalorder %s140, %s154
      %p156 = scmp.eq.s32.totalorder %s25, 0
      %p157 = por %p155, %p156
      %s159 = sadd.s32 %s158, 1
      %p162 = scmp.eq.s32.totalorder %s19, 1
      %p163 = scmp.ne.s32.totalorder %s158, %s160
      %p164 = scmp.eq.s32.totalorder %s19, 0
      %p165 = por %p163, %p164
      %p166 = scmp.ne.s32.totalorder %s158, %s160
      %p167 = scmp.eq.s32.totalorder %s24, 1
      %p168 = por %p166, %p167
      %p169 = scmp.ne.s32.totalorder %s160, %s161
      %p170 = scmp.eq.s32.totalorder %s24, 0
      %p171 = por %p169, %p170
      %p172 = scmp.ne.s32.totalorder %s160, %s161
      %p173 = scmp.eq.s32.totalorder %s25, 1
      %p174 = por %p172, %p173
      %p176 = scmp.ne.s32.totalorder %s161, %s175
      %p177 = scmp.eq.s32.totalorder %s25, 0
      %p178 = por %p176, %p177
      %s180 = sadd.s32 %s179, 1
      %p183 = scmp.eq.s32.totalorder %s19, 1
      %p184 = scmp.ne.s32.totalorder %s179, %s181
      %p185 = scmp.eq.s32.totalorder %s19, 0
      %p186 = por %p184, %p185
      %p187 = scmp.ne.s32.totalorder %s179, %s181
      %p188 = scmp.eq.s32.totalorder %s24, 1
      %p189 = por %p187, %p188
      %p190 = scmp.ne.s32.totalorder %s181, %s182
      %p191 = scmp.eq.s32.totalorder %s24, 0
      %p192 = por %p190, %p191
      %p193 = scmp.ne.s32.totalorder %s181, %s182
      %p194 = scmp.eq.s32.totalorder %s25, 1
      %p195 = por %p193, %p194
      %p197 = scmp.ne.s32.totalorder %s182, %s196
      %p198 = scmp.eq.s32.totalorder %s25, 0
      %p199 = por %p197, %p198
      %s200 = ssub.s32 %s19, %s26
      %p201 = scmp.eq.s32.totalorder %s200, 0
      %s203 = sadd.s32 %s202, 1
      %s204 = scalar_select %p201, %s202, %s203
      %p207 = pneg %p201
      %p208 = scmp.eq.s32.totalorder %s19, 1
      %p209 = por %p207, %p208
      %p210 = scmp.ne.s32.totalorder %s202, %s205
      %p211 = scmp.eq.s32.totalorder %s19, 0
      %p212 = por %p210, %p211
      %p213 = scmp.ne.s32.totalorder %s202, %s205
      %p214 = scmp.eq.s32.totalorder %s24, 1
      %p215 = por %p213, %p214
      %p216 = scmp.ne.s32.totalorder %s205, %s206
      %p217 = scmp.eq.s32.totalorder %s24, 0
      %p218 = por %p216, %p217
      %p219 = scmp.ne.s32.totalorder %s205, %s206
      %p220 = scmp.eq.s32.totalorder %s25, 1
      %p221 = por %p219, %p220
      %p223 = scmp.ne.s32.totalorder %s206, %s222
      %p224 = scmp.eq.s32.totalorder %s25, 0
      %p225 = por %p223, %p224
      %p226 = scmp.le.s32.totalorder 1, %s19
      %p227 = scmp.lt.s32.totalorder %s19, 3
      %p228 = pnand %p226, %p227
      %p229 = pneg %p228
      // Predicated region
      $region9: #{ticnn_at_forward.1} parent=5 // pred_check
        _
      $region10: #{ticnn_at_forward.1} parent=5 // pred_check_branch
        %231 = sbr.rel (%p228) target = $region12
      $region11: #{ticnn_at_forward.1} parent=5 // pred_region
        %s232 = ssub.s32 %s19, 1
        // Predicated region
        $region13: #{ticnn_at_forward.1} parent=11 // pred_check
          %p233 = pneg %p66
        $region14: #{ticnn_at_forward.1} parent=11 // pred_check_branch
          %235 = sbr.rel (%p233) target = $region16
        $region15: #{ticnn_at_forward.1} parent=11 // pred_region
          %237 = vsyncadd [#allocation4], 0
          %s238 = sshll.u32 %s1, 4
          %s239 = int_to_ptr.hbm [resolvable:$true] %s238
          %s240 = sshll.u32 [#allocation3], 4
          %s241 = int_to_ptr.vmem [resolvable:$true] %s240
          %246 = dma.hbm_to_vmem [thread:$0]  %s239, 30720, %s241, [#allocation4], 128, 128, 8
        $region16: #{ticnn_at_forward.1} parent=11 // pred_fallthru
          _
        // Predicated region
        $region17: #{ticnn_at_forward.1} parent=11 // pred_check
          %p247 = pneg %p87
        $region18: #{ticnn_at_forward.1} parent=11 // pred_check_branch
          %249 = sbr.rel (%p247) target = $region20
        $region19: #{ticnn_at_forward.1} parent=11 // pred_region
          _
        $region20: #{ticnn_at_forward.1} parent=11 // pred_fallthru
          _
        // Predicated region
        $region21: #{ticnn_at_forward.1} parent=11 // pred_check
          %p250 = pneg %p108
        $region22: #{ticnn_at_forward.1} parent=11 // pred_check_branch
          %252 = sbr.rel (%p250) target = $region24
        $region23: #{ticnn_at_forward.1} parent=11 // pred_region
          _
        $region24: #{ticnn_at_forward.1} parent=11 // pred_fallthru
          _
        // Predicated region
        $region25: #{ticnn_at_forward.1} parent=11 // pred_check
          %p253 = pneg %p129
        $region26: #{ticnn_at_forward.1} parent=11 // pred_check_branch
          %255 = sbr.rel (%p253) target = $region28
        $region27: #{ticnn_at_forward.1} parent=11 // pred_region
          _
        $region28: #{ticnn_at_forward.1} parent=11 // pred_fallthru
          _
        // Predicated region
        $region29: #{ticnn_at_forward.1} parent=11 // pred_check
          %p256 = pneg %p150
        $region30: #{ticnn_at_forward.1} parent=11 // pred_check_branch
          %258 = sbr.rel (%p256) target = $region32
        $region31: #{ticnn_at_forward.1} parent=11 // pred_region
          _
        $region32: #{ticnn_at_forward.1} parent=11 // pred_fallthru
          _
        // Predicated region
        $region33: #{ticnn_at_forward.1} parent=11 // pred_check
          %p259 = pneg %p171
        $region34: #{ticnn_at_forward.1} parent=11 // pred_check_branch
          %261 = sbr.rel (%p259) target = $region36
        $region35: #{ticnn_at_forward.1} parent=11 // pred_region
          %263 = vsyncadd [#allocation7], 0
          %s264 = sshll.u32 %s6, 4
          %s265 = int_to_ptr.hbm [resolvable:$true] %s264
          %s266 = sshll.u32 [#allocation6], 4
          %s267 = int_to_ptr.vmem [resolvable:$true] %s266
          %272 = dma.hbm_to_vmem [thread:$0]  %s265, 2048, %s267, [#allocation7], 128, 128, 8
        $region36: #{ticnn_at_forward.1} parent=11 // pred_fallthru
          _
        // Predicated region
        $region37: #{ticnn_at_forward.1} parent=11 // pred_check
          %p273 = pneg %p192
        $region38: #{ticnn_at_forward.1} parent=11 // pred_check_branch
          %275 = sbr.rel (%p273) target = $region40
        $region39: #{ticnn_at_forward.1} parent=11 // pred_region
          _
        $region40: #{ticnn_at_forward.1} parent=11 // pred_fallthru
          _
      $region12: #{ticnn_at_forward.1} parent=5 // pred_fallthru
        _
      %p276 = scmp.lt.s32.totalorder %s19, 2
      // Predicated region
      $region41: #{ticnn_at_forward.1} parent=5 // pred_check
        %p277 = pneg %p276
      $region42: #{ticnn_at_forward.1} parent=5 // pred_check_branch
        %279 = sbr.rel (%p277) target = $region44
      $region43: #{ticnn_at_forward.1} parent=5 // pred_region
        // Predicated region
        $region45: #{ticnn_at_forward.1} parent=43 // pred_check
          %p280 = pneg %p39
        $region46: #{ticnn_at_forward.1} parent=43 // pred_check_branch
          %282 = sbr.rel (%p280) target = $region48
        $region47: #{ticnn_at_forward.1} parent=43 // pred_region
          %p283 = scmp.lt.s32.totalorder %s19, 1
          %s284 = scalar_select %p283, %s19, 1
          %s285 = smul.addr %s284, 6
          %s286 = smul.addr %s285, 8
          %s287 = scalar_lea.vmem %s0, %s286
        $region48: #{ticnn_at_forward.1} parent=43 // pred_fallthru
          _
      $region44: #{ticnn_at_forward.1} parent=5 // pred_fallthru
        _
      %p288 = scmp.le.s32.totalorder 1, %s19
      %p289 = scmp.lt.s32.totalorder %s19, 3
      %p290 = pnand %p288, %p289
      %p291 = pneg %p290
      // Predicated region
      $region49: #{ticnn_at_forward.1} parent=5 // pred_check
        _
      $region50: #{ticnn_at_forward.1} parent=5 // pred_check_branch
        %293 = sbr.rel (%p290) target = $region52
      $region51: #{ticnn_at_forward.1} parent=5 // pred_region
        %s294 = ssub.s32 %s19, 1
        // Predicated region
        $region53: #{ticnn_at_forward.1} parent=51 // pred_check
          %p295 = pneg %p66
        $region54: #{ticnn_at_forward.1} parent=51 // pred_check_branch
          %297 = sbr.rel (%p295) target = $region56
        $region55: #{ticnn_at_forward.1} parent=51 // pred_region
          %299 = dma.done [#allocation4], 30720
        $region56: #{ticnn_at_forward.1} parent=51 // pred_fallthru
          _
        // Predicated region
        $region57: #{ticnn_at_forward.1} parent=51 // pred_check
          %p300 = pneg %p171
        $region58: #{ticnn_at_forward.1} parent=51 // pred_check_branch
          %302 = sbr.rel (%p300) target = $region60
        $region59: #{ticnn_at_forward.1} parent=51 // pred_region
          %304 = dma.done [#allocation7], 2048
        $region60: #{ticnn_at_forward.1} parent=51 // pred_fallthru
          _
        %p305 = scmp.lt.s32.totalorder %s24, 1
        %s306 = scalar_select %p305, %s24, 1
        %s307 = smul.addr %s306, 6
        %s308 = smul.addr %s307, 8
        %s309 = scalar_lea.vmem %s0, %s308
        %p310 = pneg %p45
        %p311 = pneg %p42
        %p312 = pneg %p66
        %p313 = pneg %p63
        %p314 = pneg %p87
        %p315 = pneg %p84
        %p316 = pneg %p108
        %p317 = pneg %p105
        %p318 = pneg %p129
        %p319 = pneg %p126
        %p320 = pneg %p150
        %p321 = pneg %p147
        %p322 = pneg %p171
        %p323 = pneg %p168
        %p324 = pneg %p192
        %p325 = pneg %p189
        %p326 = pneg %p218
        %p327 = pneg %p215
        %s328 = sand.u32 %s205, 1
        %s329 = scalar_lea.sflag [#allocation5], %s328
        %s330 = sand.u32 %s205, 1
        %s331 = scalar_lea.vmem [#allocation8], %s330
        %p332 = scmp.lt.s32.totalorder %s24, 1
        %s333 = scalar_select %p332, %s24, 1
        %s334 = smul.addr %s333, 6
        %s335 = smul.addr %s334, 8
        %s336 = scalar_lea.vmem %s0, %s335
        %337 = vst [vmem:[#allocation2] sm:$0xff] 0.0
        %338 = vst [vmem:[#allocation2 + $0x8] sm:$0xff] 0.0
        %339 = vst [vmem:[#allocation2 + $0x10] sm:$0xff] 0.0
        %340 = vst [vmem:[#allocation2 + $0x18] sm:$0xff] 0.0
        %341 = vst [vmem:[#allocation2 + $0x20] sm:$0xff] 0.0
        %342 = vst [vmem:[#allocation2 + $0x28] sm:$0xff] 0.0
        %343 = vst [vmem:[#allocation2 + $0x30] sm:$0x3] 0.0
        %v344 = vld [vmem:[%s336] sm:$0xff]
        %v345 = vld [vmem:[%s336 + $0x8] sm:$0xff]
        %v346 = vld [vmem:[%s336 + $0x10] sm:$0xff]
        %v347 = vld [vmem:[%s336 + $0x18] sm:$0xff]
        %v348 = vld [vmem:[%s336 + $0x20] sm:$0xff]
        %v349 = vld [vmem:[%s336 + $0x28] sm:$0xff]
        %vm350 = vcmask 64512
        %351 = vst.msk [vmem:[#allocation2 + $0x1] sm:$0xff] %vm350, %v344
        %352 = vst.msk [vmem:[#allocation2 + $0x9] sm:$0xff] %vm350, %v345
        %353 = vst.msk [vmem:[#allocation2 + $0x11] sm:$0xff] %vm350, %v346
        %354 = vst.msk [vmem:[#allocation2 + $0x19] sm:$0xff] %vm350, %v347
        %355 = vst.msk [vmem:[#allocation2 + $0x21] sm:$0xff] %vm350, %v348
        %356 = vst.msk [vmem:[#allocation2 + $0x29] sm:$0xff] %vm350, %v349
        %v357 = vld [vmem:[#allocation2] sm:$0xff]
        %v358 = vld [vmem:[#allocation2 + $0x8] sm:$0xff]
        %v359 = vld [vmem:[#allocation2 + $0x10] sm:$0xff]
        %v360 = vld [vmem:[#allocation2 + $0x18] sm:$0xff]
        %v361 = vld [vmem:[#allocation2 + $0x20] sm:$0xff]
        %v362 = vld [vmem:[#allocation2 + $0x28] sm:$0xff]
        %v363 = vld [vmem:[#allocation2 + $0x30] sm:$0x3]
        %vm371 = vcmask 1040384
        %v372 = vrot.slane %v357, 7
        %v373 = vrot.slane %v358, 7
        %v374 = vsel %vm371, %v372, %v373
        %v375 = vrot.slane %v359, 7
        %v376 = vsel %vm371, %v373, %v375
        %v377 = vrot.slane %v360, 7
        %v378 = vsel %vm371, %v375, %v377
        %v379 = vrot.slane %v361, 7
        %v380 = vsel %vm371, %v377, %v379
        %v381 = vrot.slane %v362, 7
        %v382 = vsel %vm371, %v379, %v381
        %v383 = vrot.slane %v363, 7
        %v384 = vsel %vm371, %v381, %v383
        %v392 = vsel %vm371, 0.0, %v372
        %vm393 = vcmask 1046528
        %v394 = vrot.slane %v357, 1
        %v395 = vrot.slane %v358, 1
        %v396 = vsel %vm393, %v394, %v395
        %v397 = vrot.slane %v359, 1
        %v398 = vsel %vm393, %v395, %v397
        %v399 = vrot.slane %v360, 1
        %v400 = vsel %vm393, %v397, %v399
        %v401 = vrot.slane %v361, 1
        %v402 = vsel %vm393, %v399, %v401
        %v403 = vrot.slane %v362, 1
        %v404 = vsel %vm393, %v401, %v403
        %v405 = vrot.slane %v363, 1
        %v406 = vsel %vm393, %v403, %v405
        %v414 = vsel %vm371, %v405, 0.0
        %v415 = vld [vmem:[#allocation3] sm:$0xff]
        %v416 = vld [vmem:[#allocation3 + $0x8] sm:$0xff]
        %v417 = vld [vmem:[#allocation3 + $0x10] sm:$0xff]
        %v418 = vld [vmem:[#allocation3 + $0x18] sm:$0xff]
        %v419 = vld [vmem:[#allocation3 + $0x20] sm:$0xff]
        %v420 = vld [vmem:[#allocation3 + $0x28] sm:$0xff]
        %v421 = vld [vmem:[#allocation3 + $0x30] sm:$0xff]
        %v422 = vld [vmem:[#allocation3 + $0x38] sm:$0xff]
        %v423 = vld [vmem:[#allocation3 + $0x40] sm:$0xff]
        %v424 = vld [vmem:[#allocation3 + $0x48] sm:$0xff]
        %v425 = vld [vmem:[#allocation3 + $0x50] sm:$0xff]
        %v426 = vld [vmem:[#allocation3 + $0x58] sm:$0xff]
        %v427 = vld [vmem:[#allocation3 + $0x60] sm:$0xff]
        %v428 = vld [vmem:[#allocation3 + $0x68] sm:$0xff]
        %v429 = vld [vmem:[#allocation3 + $0x70] sm:$0xff]
        %v430 = vld [vmem:[#allocation3 + $0x78] sm:$0xff]
        %v431 = vld [vmem:[#allocation3 + $0x80] sm:$0xff]
        %v432 = vld [vmem:[#allocation3 + $0x88] sm:$0xff]
        %v433 = vld [vmem:[#allocation3 + $0x90] sm:$0xff]
        %v434 = vld [vmem:[#allocation3 + $0x98] sm:$0xff]
        %v435 = vld [vmem:[#allocation3 + $0xa0] sm:$0xff]
        %v436 = vld [vmem:[#allocation3 + $0xa8] sm:$0xff]
        %v437 = vld [vmem:[#allocation3 + $0xb0] sm:$0xff]
        %v438 = vld [vmem:[#allocation3 + $0xb8] sm:$0xff]
        %v439 = vld [vmem:[#allocation3 + $0xc0] sm:$0xff]
        %v440 = vld [vmem:[#allocation3 + $0xc8] sm:$0xff]
        %v441 = vld [vmem:[#allocation3 + $0xd0] sm:$0xff]
        %v442 = vld [vmem:[#allocation3 + $0xd8] sm:$0xff]
        %v443 = vld [vmem:[#allocation3 + $0xe0] sm:$0xff]
        %v444 = vld [vmem:[#allocation3 + $0xe8] sm:$0xff]
        %v445 = vld [vmem:[#allocation3 + $0xf0] sm:$0xff]
        %v446 = vld [vmem:[#allocation3 + $0xf8] sm:$0xff]
        %v447 = vld [vmem:[#allocation3 + $0x100] sm:$0xff]
        %v448 = vld [vmem:[#allocation3 + $0x108] sm:$0xff]
        %v449 = vld [vmem:[#allocation3 + $0x110] sm:$0xff]
        %v450 = vld [vmem:[#allocation3 + $0x118] sm:$0xff]
        %v451 = vld [vmem:[#allocation3 + $0x120] sm:$0xff]
        %v452 = vld [vmem:[#allocation3 + $0x128] sm:$0xff]
        %v453 = vld [vmem:[#allocation3 + $0x130] sm:$0xff]
        %v454 = vld [vmem:[#allocation3 + $0x138] sm:$0xff]
        %v455 = vld [vmem:[#allocation3 + $0x140] sm:$0xff]
        %v456 = vld [vmem:[#allocation3 + $0x148] sm:$0xff]
        %v457 = vld [vmem:[#allocation3 + $0x150] sm:$0xff]
        %v458 = vld [vmem:[#allocation3 + $0x158] sm:$0xff]
        %v459 = vld [vmem:[#allocation3 + $0x160] sm:$0xff]
        %v460 = vld [vmem:[#allocation3 + $0x168] sm:$0xff]
        %v461 = vld [vmem:[#allocation3 + $0x170] sm:$0xff]
        %v462 = vld [vmem:[#allocation3 + $0x178] sm:$0xff]
        %463 = vmatpush.msra.mxu0 %v430
        %464 = vmatpush.msra.mxu0 %v429
        %465 = vmatpush.msra.mxu0 %v428
        %466 = vmatpush.msra.mxu0 %v427
        %467 = vmatpush.msra.mxu0 %v426
        %468 = vmatpush.msra.mxu0 %v425
        %469 = vmatpush.msra.mxu0 %v424
        %470 = vmatpush.msra.mxu0 %v423
        %471 = vmatpush.msra.mxu0 %v422
        %472 = vmatpush.msra.mxu0 %v421
        %473 = vmatpush.msra.mxu0 %v420
        %474 = vmatpush.msra.mxu0 %v419
        %475 = vmatpush.msra.mxu0 %v418
        %476 = vmatpush.msra.mxu0 %v417
        %477 = vmatpush.msra.mxu0 %v416
        %478 = vmatpush.msra.mxu0 %v415
        %479 = vmatmul.f32.gmra.mxu0 %v392
        %v480 = vpop.f32.mrf.mxu0
        %v481 = vadd.f32 0.0, %v480
        %482 = vmatmul.f32.gmra.mxu0 %v374
        %v483 = vpop.f32.mrf.mxu0
        %v484 = vadd.f32 0.0, %v483
        %485 = vmatmul.f32.gmra.mxu0 %v376
        %v486 = vpop.f32.mrf.mxu0
        %v487 = vadd.f32 0.0, %v486
        %488 = vmatmul.f32.gmra.mxu0 %v378
        %v489 = vpop.f32.mrf.mxu0
        %v490 = vadd.f32 0.0, %v489
        %491 = vmatmul.f32.gmra.mxu0 %v380
        %v492 = vpop.f32.mrf.mxu0
        %v493 = vadd.f32 0.0, %v492
        %494 = vmatmul.f32.gmra.mxu0 %v382
        %v495 = vpop.f32.mrf.mxu0
        %v496 = vadd.f32 0.0, %v495
        %497 = vmatmul.f32.gmra.mxu0 %v384
        %v498 = vpop.f32.mrf.mxu0
        %v499 = vadd.f32 0.0, %v498
        %500 = vdwg.mxu0
        %501 = vmatpush.msra.mxu0 %v446
        %502 = vmatpush.msra.mxu0 %v445
        %503 = vmatpush.msra.mxu0 %v444
        %504 = vmatpush.msra.mxu0 %v443
        %505 = vmatpush.msra.mxu0 %v442
        %506 = vmatpush.msra.mxu0 %v441
        %507 = vmatpush.msra.mxu0 %v440
        %508 = vmatpush.msra.mxu0 %v439
        %509 = vmatpush.msra.mxu0 %v438
        %510 = vmatpush.msra.mxu0 %v437
        %511 = vmatpush.msra.mxu0 %v436
        %512 = vmatpush.msra.mxu0 %v435
        %513 = vmatpush.msra.mxu0 %v434
        %514 = vmatpush.msra.mxu0 %v433
        %515 = vmatpush.msra.mxu0 %v432
        %516 = vmatpush.msra.mxu0 %v431
        %517 = vmatmul.f32.gmra.mxu0 %v357
        %v518 = vpop.f32.mrf.mxu0
        %v519 = vadd.f32 %v481, %v518
        %520 = vmatmul.f32.gmra.mxu0 %v358
        %v521 = vpop.f32.mrf.mxu0
        %v522 = vadd.f32 %v484, %v521
        %523 = vmatmul.f32.gmra.mxu0 %v359
        %v524 = vpop.f32.mrf.mxu0
        %v525 = vadd.f32 %v487, %v524
        %526 = vmatmul.f32.gmra.mxu0 %v360
        %v527 = vpop.f32.mrf.mxu0
        %v528 = vadd.f32 %v490, %v527
        %529 = vmatmul.f32.gmra.mxu0 %v361
        %v530 = vpop.f32.mrf.mxu0
        %v531 = vadd.f32 %v493, %v530
        %532 = vmatmul.f32.gmra.mxu0 %v362
        %v533 = vpop.f32.mrf.mxu0
        %v534 = vadd.f32 %v496, %v533
        %535 = vmatmul.f32.gmra.mxu0 %v363
        %v536 = vpop.f32.mrf.mxu0
        %v537 = vadd.f32 %v499, %v536
        %538 = vdwg.mxu0
        %539 = vmatpush.msra.mxu0 %v462
        %540 = vmatpush.msra.mxu0 %v461
        %541 = vmatpush.msra.mxu0 %v460
        %542 = vmatpush.msra.mxu0 %v459
        %543 = vmatpush.msra.mxu0 %v458
        %544 = vmatpush.msra.mxu0 %v457
        %545 = vmatpush.msra.mxu0 %v456
        %546 = vmatpush.msra.mxu0 %v455
        %547 = vmatpush.msra.mxu0 %v454
        %548 = vmatpush.msra.mxu0 %v453
        %549 = vmatpush.msra.mxu0 %v452
        %550 = vmatpush.msra.mxu0 %v451
        %551 = vmatpush.msra.mxu0 %v450
        %552 = vmatpush.msra.mxu0 %v449
        %553 = vmatpush.msra.mxu0 %v448
        %554 = vmatpush.msra.mxu0 %v447
        %555 = vmatmul.f32.gmra.mxu0 %v396
        %v556 = vpop.f32.mrf.mxu0
        %v557 = vadd.f32 %v519, %v556
        %558 = vmatmul.f32.gmra.mxu0 %v398
        %v559 = vpop.f32.mrf.mxu0
        %v560 = vadd.f32 %v522, %v559
        %561 = vmatmul.f32.gmra.mxu0 %v400
        %v562 = vpop.f32.mrf.mxu0
        %v563 = vadd.f32 %v525, %v562
        %564 = vmatmul.f32.gmra.mxu0 %v402
        %v565 = vpop.f32.mrf.mxu0
        %v566 = vadd.f32 %v528, %v565
        %567 = vmatmul.f32.gmra.mxu0 %v404
        %v568 = vpop.f32.mrf.mxu0
        %v569 = vadd.f32 %v531, %v568
        %570 = vmatmul.f32.gmra.mxu0 %v406
        %v571 = vpop.f32.mrf.mxu0
        %v572 = vadd.f32 %v534, %v571
        %573 = vmatmul.f32.gmra.mxu0 %v414
        %v574 = vpop.f32.mrf.mxu0
        %v575 = vadd.f32 %v537, %v574
        %576 = vdwg.mxu0
        %v577 = vld [vmem:[%s2] sm:$0x1]
        %v578 = vperm.slane %v577, 0
        %v579 = vmul.f32 %v557, %v578
        %v580 = vmul.f32 %v560, %v578
        %v581 = vmul.f32 %v563, %v578
        %v582 = vmul.f32 %v566, %v578
        %v583 = vmul.f32 %v569, %v578
        %v584 = vmul.f32 %v572, %v578
        %v585 = vmul.f32 %v575, %v578
        %v586 = vld [vmem:[%s3] sm:$0x1]
        %v587 = vperm.slane %v586, 0
        %v588 = vadd.f32 %v579, %v587
        %v589 = vadd.f32 %v580, %v587
        %v590 = vadd.f32 %v581, %v587
        %v591 = vadd.f32 %v582, %v587
        %v592 = vadd.f32 %v583, %v587
        %v593 = vadd.f32 %v584, %v587
        %v594 = vadd.f32 %v585, %v587
        %v595 = vmax.f32 %v588, 0.0
        %v596 = vmax.f32 %v589, 0.0
        %v597 = vmax.f32 %v590, 0.0
        %v598 = vmax.f32 %v591, 0.0
        %v599 = vmax.f32 %v592, 0.0
        %v600 = vmax.f32 %v593, 0.0
        %v601 = vmax.f32 %v594, 0.0
        %v602 = vlaneseq
        %v603 = vshrl.u32 %v602, 7
        %v604 = vadd.s32 %v603, 8
        %v605 = vadd.s32 %v603, 16
        %v606 = vadd.s32 %v603, 24
        %v607 = vadd.s32 %v603, 32
        %v608 = vadd.s32 %v603, 40
        %v609 = vadd.s32 %v603, 48
        %vm610 = vcmp.ge.s32.totalorder %v603, 1
        %vm611 = vcmp.ge.s32.totalorder %v604, 1
        %vm612 = vcmp.ge.s32.totalorder %v605, 1
        %vm613 = vcmp.ge.s32.totalorder %v606, 1
        %vm614 = vcmp.ge.s32.totalorder %v607, 1
        %vm615 = vcmp.ge.s32.totalorder %v608, 1
        %vm616 = vcmp.ge.s32.totalorder %v609, 1
        %vm617 = vcmp.le.s32.totalorder %v603, 48
        %vm618 = vcmp.le.s32.totalorder %v604, 48
        %vm619 = vcmp.le.s32.totalorder %v605, 48
        %vm620 = vcmp.le.s32.totalorder %v606, 48
        %vm621 = vcmp.le.s32.totalorder %v607, 48
        %vm622 = vcmp.le.s32.totalorder %v608, 48
        %vm623 = vcmp.le.s32.totalorder %v609, 48
        %vm624 = vmand %vm610, %vm617
        %vm625 = vmand %vm611, %vm618
        %vm626 = vmand %vm612, %vm619
        %vm627 = vmand %vm613, %vm620
        %vm628 = vmand %vm614, %vm621
        %vm629 = vmand %vm615, %vm622
        %vm630 = vmand %vm616, %vm623
        %v631 = vsel %vm624, %v595, 0.0
        %v632 = vsel %vm625, %v596, 0.0
        %v633 = vsel %vm626, %v597, 0.0
        %v634 = vsel %vm627, %v598, 0.0
        %v635 = vsel %vm628, %v599, 0.0
        %v636 = vsel %vm629, %v600, 0.0
        %v637 = vsel %vm630, %v601, 0.0
        %v645 = vrot.slane %v631, 7
        %v646 = vrot.slane %v632, 7
        %v647 = vsel %vm371, %v645, %v646
        %v648 = vrot.slane %v633, 7
        %v649 = vsel %vm371, %v646, %v648
        %v650 = vrot.slane %v634, 7
        %v651 = vsel %vm371, %v648, %v650
        %v652 = vrot.slane %v635, 7
        %v653 = vsel %vm371, %v650, %v652
        %v654 = vrot.slane %v636, 7
        %v655 = vsel %vm371, %v652, %v654
        %v656 = vrot.slane %v637, 7
        %v657 = vsel %vm371, %v654, %v656
        %v665 = vsel %vm371, 0.0, %v645
        %v666 = vrot.slane %v631, 1
        %v667 = vrot.slane %v632, 1
        %v668 = vsel %vm393, %v666, %v667
        %v669 = vrot.slane %v633, 1
        %v670 = vsel %vm393, %v667, %v669
        %v671 = vrot.slane %v634, 1
        %v672 = vsel %vm393, %v669, %v671
        %v673 = vrot.slane %v635, 1
        %v674 = vsel %vm393, %v671, %v673
        %v675 = vrot.slane %v636, 1
        %v676 = vsel %vm393, %v673, %v675
        %v677 = vrot.slane %v637, 1
        %v678 = vsel %vm393, %v675, %v677
        %v686 = vsel %vm371, %v677, 0.0
        %s687 = scalar_lea.vmem [#allocation3], 384
        %v688 = vld [vmem:[%s687] sm:$0xff]
        %v689 = vld [vmem:[%s687 + $0x8] sm:$0xff]
        %v690 = vld [vmem:[%s687 + $0x10] sm:$0xff]
        %v691 = vld [vmem:[%s687 + $0x18] sm:$0xff]
        %v692 = vld [vmem:[%s687 + $0x20] sm:$0xff]
        %v693 = vld [vmem:[%s687 + $0x28] sm:$0xff]
        %v694 = vld [vmem:[%s687 + $0x30] sm:$0xff]
        %v695 = vld [vmem:[%s687 + $0x38] sm:$0xff]
        %v696 = vld [vmem:[%s687 + $0x40] sm:$0xff]
        %v697 = vld [vmem:[%s687 + $0x48] sm:$0xff]
        %v698 = vld [vmem:[%s687 + $0x50] sm:$0xff]
        %v699 = vld [vmem:[%s687 + $0x58] sm:$0xff]
        %v700 = vld [vmem:[%s687 + $0x60] sm:$0xff]
        %v701 = vld [vmem:[%s687 + $0x68] sm:$0xff]
        %v702 = vld [vmem:[%s687 + $0x70] sm:$0xff]
        %v703 = vld [vmem:[%s687 + $0x78] sm:$0xff]
        %v704 = vld [vmem:[%s687 + $0x80] sm:$0xff]
        %v705 = vld [vmem:[%s687 + $0x88] sm:$0xff]
        %v706 = vld [vmem:[%s687 + $0x90] sm:$0xff]
        %v707 = vld [vmem:[%s687 + $0x98] sm:$0xff]
        %v708 = vld [vmem:[%s687 + $0xa0] sm:$0xff]
        %v709 = vld [vmem:[%s687 + $0xa8] sm:$0xff]
        %v710 = vld [vmem:[%s687 + $0xb0] sm:$0xff]
        %v711 = vld [vmem:[%s687 + $0xb8] sm:$0xff]
        %v712 = vld [vmem:[%s687 + $0xc0] sm:$0xff]
        %v713 = vld [vmem:[%s687 + $0xc8] sm:$0xff]
        %v714 = vld [vmem:[%s687 + $0xd0] sm:$0xff]
        %v715 = vld [vmem:[%s687 + $0xd8] sm:$0xff]
        %v716 = vld [vmem:[%s687 + $0xe0] sm:$0xff]
        %v717 = vld [vmem:[%s687 + $0xe8] sm:$0xff]
        %v718 = vld [vmem:[%s687 + $0xf0] sm:$0xff]
        %v719 = vld [vmem:[%s687 + $0xf8] sm:$0xff]
        %v720 = vld [vmem:[%s687 + $0x100] sm:$0xff]
        %v721 = vld [vmem:[%s687 + $0x108] sm:$0xff]
        %v722 = vld [vmem:[%s687 + $0x110] sm:$0xff]
        %v723 = vld [vmem:[%s687 + $0x118] sm:$0xff]
        %v724 = vld [vmem:[%s687 + $0x120] sm:$0xff]
        %v725 = vld [vmem:[%s687 + $0x128] sm:$0xff]
        %v726 = vld [vmem:[%s687 + $0x130] sm:$0xff]
        %v727 = vld [vmem:[%s687 + $0x138] sm:$0xff]
        %v728 = vld [vmem:[%s687 + $0x140] sm:$0xff]
        %v729 = vld [vmem:[%s687 + $0x148] sm:$0xff]
        %v730 = vld [vmem:[%s687 + $0x150] sm:$0xff]
        %v731 = vld [vmem:[%s687 + $0x158] sm:$0xff]
        %v732 = vld [vmem:[%s687 + $0x160] sm:$0xff]
        %v733 = vld [vmem:[%s687 + $0x168] sm:$0xff]
        %v734 = vld [vmem:[%s687 + $0x170] sm:$0xff]
        %v735 = vld [vmem:[%s687 + $0x178] sm:$0xff]
        %736 = vmatpush.msra.mxu0 %v703
        %737 = vmatpush.msra.mxu0 %v702
        %738 = vmatpush.msra.mxu0 %v701
        %739 = vmatpush.msra.mxu0 %v700
        %740 = vmatpush.msra.mxu0 %v699
        %741 = vmatpush.msra.mxu0 %v698
        %742 = vmatpush.msra.mxu0 %v697
        %743 = vmatpush.msra.mxu0 %v696
        %744 = vmatpush.msra.mxu0 %v695
        %745 = vmatpush.msra.mxu0 %v694
        %746 = vmatpush.msra.mxu0 %v693
        %747 = vmatpush.msra.mxu0 %v692
        %748 = vmatpush.msra.mxu0 %v691
        %749 = vmatpush.msra.mxu0 %v690
        %750 = vmatpush.msra.mxu0 %v689
        %751 = vmatpush.msra.mxu0 %v688
        %752 = vmatmul.f32.gmra.mxu0 %v665
        %v753 = vpop.f32.mrf.mxu0
        %v754 = vadd.f32 0.0, %v753
        %755 = vmatmul.f32.gmra.mxu0 %v647
        %v756 = vpop.f32.mrf.mxu0
        %v757 = vadd.f32 0.0, %v756
        %758 = vmatmul.f32.gmra.mxu0 %v649
        %v759 = vpop.f32.mrf.mxu0
        %v760 = vadd.f32 0.0, %v759
        %761 = vmatmul.f32.gmra.mxu0 %v651
        %v762 = vpop.f32.mrf.mxu0
        %v763 = vadd.f32 0.0, %v762
        %764 = vmatmul.f32.gmra.mxu0 %v653
        %v765 = vpop.f32.mrf.mxu0
        %v766 = vadd.f32 0.0, %v765
        %767 = vmatmul.f32.gmra.mxu0 %v655
        %v768 = vpop.f32.mrf.mxu0
        %v769 = vadd.f32 0.0, %v768
        %770 = vmatmul.f32.gmra.mxu0 %v657
        %v771 = vpop.f32.mrf.mxu0
        %v772 = vadd.f32 0.0, %v771
        %773 = vdwg.mxu0
        %774 = vmatpush.msra.mxu0 %v719
        %775 = vmatpush.msra.mxu0 %v718
        %776 = vmatpush.msra.mxu0 %v717
        %777 = vmatpush.msra.mxu0 %v716
        %778 = vmatpush.msra.mxu0 %v715
        %779 = vmatpush.msra.mxu0 %v714
        %780 = vmatpush.msra.mxu0 %v713
        %781 = vmatpush.msra.mxu0 %v712
        %782 = vmatpush.msra.mxu0 %v711
        %783 = vmatpush.msra.mxu0 %v710
        %784 = vmatpush.msra.mxu0 %v709
        %785 = vmatpush.msra.mxu0 %v708
        %786 = vmatpush.msra.mxu0 %v707
        %787 = vmatpush.msra.mxu0 %v706
        %788 = vmatpush.msra.mxu0 %v705
        %789 = vmatpush.msra.mxu0 %v704
        %790 = vmatmul.f32.gmra.mxu0 %v631
        %v791 = vpop.f32.mrf.mxu0
        %v792 = vadd.f32 %v754, %v791
        %793 = vmatmul.f32.gmra.mxu0 %v632
        %v794 = vpop.f32.mrf.mxu0
        %v795 = vadd.f32 %v757, %v794
        %796 = vmatmul.f32.gmra.mxu0 %v633
        %v797 = vpop.f32.mrf.mxu0
        %v798 = vadd.f32 %v760, %v797
        %799 = vmatmul.f32.gmra.mxu0 %v634
        %v800 = vpop.f32.mrf.mxu0
        %v801 = vadd.f32 %v763, %v800
        %802 = vmatmul.f32.gmra.mxu0 %v635
        %v803 = vpop.f32.mrf.mxu0
        %v804 = vadd.f32 %v766, %v803
        %805 = vmatmul.f32.gmra.mxu0 %v636
        %v806 = vpop.f32.mrf.mxu0
        %v807 = vadd.f32 %v769, %v806
        %808 = vmatmul.f32.gmra.mxu0 %v637
        %v809 = vpop.f32.mrf.mxu0
        %v810 = vadd.f32 %v772, %v809
        %811 = vdwg.mxu0
        %812 = vmatpush.msra.mxu0 %v735
        %813 = vmatpush.msra.mxu0 %v734
        %814 = vmatpush.msra.mxu0 %v733
        %815 = vmatpush.msra.mxu0 %v732
        %816 = vmatpush.msra.mxu0 %v731
        %817 = vmatpush.msra.mxu0 %v730
        %818 = vmatpush.msra.mxu0 %v729
        %819 = vmatpush.msra.mxu0 %v728
        %820 = vmatpush.msra.mxu0 %v727
        %821 = vmatpush.msra.mxu0 %v726
        %822 = vmatpush.msra.mxu0 %v725
        %823 = vmatpush.msra.mxu0 %v724
        %824 = vmatpush.msra.mxu0 %v723
        %825 = vmatpush.msra.mxu0 %v722
        %826 = vmatpush.msra.mxu0 %v721
        %827 = vmatpush.msra.mxu0 %v720
        %828 = vmatmul.f32.gmra.mxu0 %v668
        %v829 = vpop.f32.mrf.mxu0
        %v830 = vadd.f32 %v792, %v829
        %831 = vmatmul.f32.gmra.mxu0 %v670
        %v832 = vpop.f32.mrf.mxu0
        %v833 = vadd.f32 %v795, %v832
        %834 = vmatmul.f32.gmra.mxu0 %v672
        %v835 = vpop.f32.mrf.mxu0
        %v836 = vadd.f32 %v798, %v835
        %837 = vmatmul.f32.gmra.mxu0 %v674
        %v838 = vpop.f32.mrf.mxu0
        %v839 = vadd.f32 %v801, %v838
        %840 = vmatmul.f32.gmra.mxu0 %v676
        %v841 = vpop.f32.mrf.mxu0
        %v842 = vadd.f32 %v804, %v841
        %843 = vmatmul.f32.gmra.mxu0 %v678
        %v844 = vpop.f32.mrf.mxu0
        %v845 = vadd.f32 %v807, %v844
        %846 = vmatmul.f32.gmra.mxu0 %v686
        %v847 = vpop.f32.mrf.mxu0
        %v848 = vadd.f32 %v810, %v847
        %849 = vdwg.mxu0
        %v850 = vld [vmem:[%s2 + $0x1] sm:$0x1]
        %v851 = vperm.slane %v850, 0
        %v852 = vmul.f32 %v830, %v851
        %v853 = vmul.f32 %v833, %v851
        %v854 = vmul.f32 %v836, %v851
        %v855 = vmul.f32 %v839, %v851
        %v856 = vmul.f32 %v842, %v851
        %v857 = vmul.f32 %v845, %v851
        %v858 = vmul.f32 %v848, %v851
        %v859 = vld [vmem:[%s3 + $0x1] sm:$0x1]
        %v860 = vperm.slane %v859, 0
        %v861 = vadd.f32 %v852, %v860
        %v862 = vadd.f32 %v853, %v860
        %v863 = vadd.f32 %v854, %v860
        %v864 = vadd.f32 %v855, %v860
        %v865 = vadd.f32 %v856, %v860
        %v866 = vadd.f32 %v857, %v860
        %v867 = vadd.f32 %v858, %v860
        %v868 = vmax.f32 %v861, 0.0
        %v869 = vmax.f32 %v862, 0.0
        %v870 = vmax.f32 %v863, 0.0
        %v871 = vmax.f32 %v864, 0.0
        %v872 = vmax.f32 %v865, 0.0
        %v873 = vmax.f32 %v866, 0.0
        %v874 = vmax.f32 %v867, 0.0
        %v875 = vsel %vm624, %v868, 0.0
        %v876 = vsel %vm625, %v869, 0.0
        %v877 = vsel %vm626, %v870, 0.0
        %v878 = vsel %vm627, %v871, 0.0
        %v879 = vsel %vm628, %v872, 0.0
        %v880 = vsel %vm629, %v873, 0.0
        %v881 = vsel %vm630, %v874, 0.0
        %v889 = vrot.slane %v875, 7
        %v890 = vrot.slane %v876, 7
        %v891 = vsel %vm371, %v889, %v890
        %v892 = vrot.slane %v877, 7
        %v893 = vsel %vm371, %v890, %v892
        %v894 = vrot.slane %v878, 7
        %v895 = vsel %vm371, %v892, %v894
        %v896 = vrot.slane %v879, 7
        %v897 = vsel %vm371, %v894, %v896
        %v898 = vrot.slane %v880, 7
        %v899 = vsel %vm371, %v896, %v898
        %v900 = vrot.slane %v881, 7
        %v901 = vsel %vm371, %v898, %v900
        %v909 = vsel %vm371, 0.0, %v889
        %v910 = vrot.slane %v875, 1
        %v911 = vrot.slane %v876, 1
        %v912 = vsel %vm393, %v910, %v911
        %v913 = vrot.slane %v877, 1
        %v914 = vsel %vm393, %v911, %v913
        %v915 = vrot.slane %v878, 1
        %v916 = vsel %vm393, %v913, %v915
        %v917 = vrot.slane %v879, 1
        %v918 = vsel %vm393, %v915, %v917
        %v919 = vrot.slane %v880, 1
        %v920 = vsel %vm393, %v917, %v919
        %v921 = vrot.slane %v881, 1
        %v922 = vsel %vm393, %v919, %v921
        %v930 = vsel %vm371, %v921, 0.0
        %s931 = scalar_lea.vmem [#allocation3], 768
        %v932 = vld [vmem:[%s931] sm:$0xff]
        %v933 = vld [vmem:[%s931 + $0x8] sm:$0xff]
        %v934 = vld [vmem:[%s931 + $0x10] sm:$0xff]
        %v935 = vld [vmem:[%s931 + $0x18] sm:$0xff]
        %v936 = vld [vmem:[%s931 + $0x20] sm:$0xff]
        %v937 = vld [vmem:[%s931 + $0x28] sm:$0xff]
        %v938 = vld [vmem:[%s931 + $0x30] sm:$0xff]
        %v939 = vld [vmem:[%s931 + $0x38] sm:$0xff]
        %v940 = vld [vmem:[%s931 + $0x40] sm:$0xff]
        %v941 = vld [vmem:[%s931 + $0x48] sm:$0xff]
        %v942 = vld [vmem:[%s931 + $0x50] sm:$0xff]
        %v943 = vld [vmem:[%s931 + $0x58] sm:$0xff]
        %v944 = vld [vmem:[%s931 + $0x60] sm:$0xff]
        %v945 = vld [vmem:[%s931 + $0x68] sm:$0xff]
        %v946 = vld [vmem:[%s931 + $0x70] sm:$0xff]
        %v947 = vld [vmem:[%s931 + $0x78] sm:$0xff]
        %v948 = vld [vmem:[%s931 + $0x80] sm:$0xff]
        %v949 = vld [vmem:[%s931 + $0x88] sm:$0xff]
        %v950 = vld [vmem:[%s931 + $0x90] sm:$0xff]
        %v951 = vld [vmem:[%s931 + $0x98] sm:$0xff]
        %v952 = vld [vmem:[%s931 + $0xa0] sm:$0xff]
        %v953 = vld [vmem:[%s931 + $0xa8] sm:$0xff]
        %v954 = vld [vmem:[%s931 + $0xb0] sm:$0xff]
        %v955 = vld [vmem:[%s931 + $0xb8] sm:$0xff]
        %v956 = vld [vmem:[%s931 + $0xc0] sm:$0xff]
        %v957 = vld [vmem:[%s931 + $0xc8] sm:$0xff]
        %v958 = vld [vmem:[%s931 + $0xd0] sm:$0xff]
        %v959 = vld [vmem:[%s931 + $0xd8] sm:$0xff]
        %v960 = vld [vmem:[%s931 + $0xe0] sm:$0xff]
        %v961 = vld [vmem:[%s931 + $0xe8] sm:$0xff]
        %v962 = vld [vmem:[%s931 + $0xf0] sm:$0xff]
        %v963 = vld [vmem:[%s931 + $0xf8] sm:$0xff]
        %v964 = vld [vmem:[%s931 + $0x100] sm:$0xff]
        %v965 = vld [vmem:[%s931 + $0x108] sm:$0xff]
        %v966 = vld [vmem:[%s931 + $0x110] sm:$0xff]
        %v967 = vld [vmem:[%s931 + $0x118] sm:$0xff]
        %v968 = vld [vmem:[%s931 + $0x120] sm:$0xff]
        %v969 = vld [vmem:[%s931 + $0x128] sm:$0xff]
        %v970 = vld [vmem:[%s931 + $0x130] sm:$0xff]
        %v971 = vld [vmem:[%s931 + $0x138] sm:$0xff]
        %v972 = vld [vmem:[%s931 + $0x140] sm:$0xff]
        %v973 = vld [vmem:[%s931 + $0x148] sm:$0xff]
        %v974 = vld [vmem:[%s931 + $0x150] sm:$0xff]
        %v975 = vld [vmem:[%s931 + $0x158] sm:$0xff]
        %v976 = vld [vmem:[%s931 + $0x160] sm:$0xff]
        %v977 = vld [vmem:[%s931 + $0x168] sm:$0xff]
        %v978 = vld [vmem:[%s931 + $0x170] sm:$0xff]
        %v979 = vld [vmem:[%s931 + $0x178] sm:$0xff]
        %980 = vmatpush.msra.mxu0 %v947
        %981 = vmatpush.msra.mxu0 %v946
        %982 = vmatpush.msra.mxu0 %v945
        %983 = vmatpush.msra.mxu0 %v944
        %984 = vmatpush.msra.mxu0 %v943
        %985 = vmatpush.msra.mxu0 %v942
        %986 = vmatpush.msra.mxu0 %v941
        %987 = vmatpush.msra.mxu0 %v940
        %988 = vmatpush.msra.mxu0 %v939
        %989 = vmatpush.msra.mxu0 %v938
        %990 = vmatpush.msra.mxu0 %v937
        %991 = vmatpush.msra.mxu0 %v936
        %992 = vmatpush.msra.mxu0 %v935
        %993 = vmatpush.msra.mxu0 %v934
        %994 = vmatpush.msra.mxu0 %v933
        %995 = vmatpush.msra.mxu0 %v932
        %996 = vmatmul.f32.gmra.mxu0 %v909
        %v997 = vpop.f32.mrf.mxu0
        %v998 = vadd.f32 0.0, %v997
        %999 = vmatmul.f32.gmra.mxu0 %v891
        %v1000 = vpop.f32.mrf.mxu0
        %v1001 = vadd.f32 0.0, %v1000
        %1002 = vmatmul.f32.gmra.mxu0 %v893
        %v1003 = vpop.f32.mrf.mxu0
        %v1004 = vadd.f32 0.0, %v1003
        %1005 = vmatmul.f32.gmra.mxu0 %v895
        %v1006 = vpop.f32.mrf.mxu0
        %v1007 = vadd.f32 0.0, %v1006
        %1008 = vmatmul.f32.gmra.mxu0 %v897
        %v1009 = vpop.f32.mrf.mxu0
        %v1010 = vadd.f32 0.0, %v1009
        %1011 = vmatmul.f32.gmra.mxu0 %v899
        %v1012 = vpop.f32.mrf.mxu0
        %v1013 = vadd.f32 0.0, %v1012
        %1014 = vmatmul.f32.gmra.mxu0 %v901
        %v1015 = vpop.f32.mrf.mxu0
        %v1016 = vadd.f32 0.0, %v1015
        %1017 = vdwg.mxu0
        %1018 = vmatpush.msra.mxu0 %v963
        %1019 = vmatpush.msra.mxu0 %v962
        %1020 = vmatpush.msra.mxu0 %v961
        %1021 = vmatpush.msra.mxu0 %v960
        %1022 = vmatpush.msra.mxu0 %v959
        %1023 = vmatpush.msra.mxu0 %v958
        %1024 = vmatpush.msra.mxu0 %v957
        %1025 = vmatpush.msra.mxu0 %v956
        %1026 = vmatpush.msra.mxu0 %v955
        %1027 = vmatpush.msra.mxu0 %v954
        %1028 = vmatpush.msra.mxu0 %v953
        %1029 = vmatpush.msra.mxu0 %v952
        %1030 = vmatpush.msra.mxu0 %v951
        %1031 = vmatpush.msra.mxu0 %v950
        %1032 = vmatpush.msra.mxu0 %v949
        %1033 = vmatpush.msra.mxu0 %v948
        %1034 = vmatmul.f32.gmra.mxu0 %v875
        %v1035 = vpop.f32.mrf.mxu0
        %v1036 = vadd.f32 %v998, %v1035
        %1037 = vmatmul.f32.gmra.mxu0 %v876
        %v1038 = vpop.f32.mrf.mxu0
        %v1039 = vadd.f32 %v1001, %v1038
        %1040 = vmatmul.f32.gmra.mxu0 %v877
        %v1041 = vpop.f32.mrf.mxu0
        %v1042 = vadd.f32 %v1004, %v1041
        %1043 = vmatmul.f32.gmra.mxu0 %v878
        %v1044 = vpop.f32.mrf.mxu0
        %v1045 = vadd.f32 %v1007, %v1044
        %1046 = vmatmul.f32.gmra.mxu0 %v879
        %v1047 = vpop.f32.mrf.mxu0
        %v1048 = vadd.f32 %v1010, %v1047
        %1049 = vmatmul.f32.gmra.mxu0 %v880
        %v1050 = vpop.f32.mrf.mxu0
        %v1051 = vadd.f32 %v1013, %v1050
        %1052 = vmatmul.f32.gmra.mxu0 %v881
        %v1053 = vpop.f32.mrf.mxu0
        %v1054 = vadd.f32 %v1016, %v1053
        %1055 = vdwg.mxu0
        %1056 = vmatpush.msra.mxu0 %v979
        %1057 = vmatpush.msra.mxu0 %v978
        %1058 = vmatpush.msra.mxu0 %v977
        %1059 = vmatpush.msra.mxu0 %v976
        %1060 = vmatpush.msra.mxu0 %v975
        %1061 = vmatpush.msra.mxu0 %v974
        %1062 = vmatpush.msra.mxu0 %v973
        %1063 = vmatpush.msra.mxu0 %v972
        %1064 = vmatpush.msra.mxu0 %v971
        %1065 = vmatpush.msra.mxu0 %v970
        %1066 = vmatpush.msra.mxu0 %v969
        %1067 = vmatpush.msra.mxu0 %v968
        %1068 = vmatpush.msra.mxu0 %v967
        %1069 = vmatpush.msra.mxu0 %v966
        %1070 = vmatpush.msra.mxu0 %v965
        %1071 = vmatpush.msra.mxu0 %v964
        %1072 = vmatmul.f32.gmra.mxu0 %v912
        %v1073 = vpop.f32.mrf.mxu0
        %v1074 = vadd.f32 %v1036, %v1073
        %1075 = vmatmul.f32.gmra.mxu0 %v914
        %v1076 = vpop.f32.mrf.mxu0
        %v1077 = vadd.f32 %v1039, %v1076
        %1078 = vmatmul.f32.gmra.mxu0 %v916
        %v1079 = vpop.f32.mrf.mxu0
        %v1080 = vadd.f32 %v1042, %v1079
        %1081 = vmatmul.f32.gmra.mxu0 %v918
        %v1082 = vpop.f32.mrf.mxu0
        %v1083 = vadd.f32 %v1045, %v1082
        %1084 = vmatmul.f32.gmra.mxu0 %v920
        %v1085 = vpop.f32.mrf.mxu0
        %v1086 = vadd.f32 %v1048, %v1085
        %1087 = vmatmul.f32.gmra.mxu0 %v922
        %v1088 = vpop.f32.mrf.mxu0
        %v1089 = vadd.f32 %v1051, %v1088
        %1090 = vmatmul.f32.gmra.mxu0 %v930
        %v1091 = vpop.f32.mrf.mxu0
        %v1092 = vadd.f32 %v1054, %v1091
        %1093 = vdwg.mxu0
        %v1094 = vld [vmem:[%s2 + $0x2] sm:$0x1]
        %v1095 = vperm.slane %v1094, 0
        %v1096 = vmul.f32 %v1074, %v1095
        %v1097 = vmul.f32 %v1077, %v1095
        %v1098 = vmul.f32 %v1080, %v1095
        %v1099 = vmul.f32 %v1083, %v1095
        %v1100 = vmul.f32 %v1086, %v1095
        %v1101 = vmul.f32 %v1089, %v1095
        %v1102 = vmul.f32 %v1092, %v1095
        %v1103 = vld [vmem:[%s3 + $0x2] sm:$0x1]
        %v1104 = vperm.slane %v1103, 0
        %v1105 = vadd.f32 %v1096, %v1104
        %v1106 = vadd.f32 %v1097, %v1104
        %v1107 = vadd.f32 %v1098, %v1104
        %v1108 = vadd.f32 %v1099, %v1104
        %v1109 = vadd.f32 %v1100, %v1104
        %v1110 = vadd.f32 %v1101, %v1104
        %v1111 = vadd.f32 %v1102, %v1104
        %v1112 = vmax.f32 %v1105, 0.0
        %v1113 = vmax.f32 %v1106, 0.0
        %v1114 = vmax.f32 %v1107, 0.0
        %v1115 = vmax.f32 %v1108, 0.0
        %v1116 = vmax.f32 %v1109, 0.0
        %v1117 = vmax.f32 %v1110, 0.0
        %v1118 = vmax.f32 %v1111, 0.0
        %v1119 = vsel %vm624, %v1112, 0.0
        %v1120 = vsel %vm625, %v1113, 0.0
        %v1121 = vsel %vm626, %v1114, 0.0
        %v1122 = vsel %vm627, %v1115, 0.0
        %v1123 = vsel %vm628, %v1116, 0.0
        %v1124 = vsel %vm629, %v1117, 0.0
        %v1125 = vsel %vm630, %v1118, 0.0
        %v1126 = vld [vmem:[%s4] sm:$0xff]
        %v1127 = vld [vmem:[%s4 + $0x8] sm:$0xff]
        %v1128 = vld [vmem:[%s4 + $0x10] sm:$0x3]
        %vm1129 = vcmask 408576
        %v1131 = vsel %vm1129, %v1126, 0
        %v1134 = vsel %vm1129, %v1127, 0
        %v1137 = vsel %vm1129, %v1128, 0
        %vm1139 = vcmask 1041408
        %v1141 = vsel %vm1139, %v1125, 0
        %1143 = vmatpush.msra.mxu0 0.0
        %1144 = vmatpush.msra.mxu0 0.0
        %1145 = vmatpush.msra.mxu0 0.0
        %1146 = vmatpush.msra.mxu0 0.0
        %1147 = vmatpush.msra.mxu0 0.0
        %1148 = vmatpush.msra.mxu0 0.0
        %1149 = vmatpush.msra.mxu0 0.0
        %1150 = vmatpush.msra.mxu0 0.0
        %1151 = vmatpush.msra.mxu0 0.0
        %1152 = vmatpush.msra.mxu0 %v1141
        %1153 = vmatpush.msra.mxu0 %v1124
        %1154 = vmatpush.msra.mxu0 %v1123
        %1155 = vmatpush.msra.mxu0 %v1122
        %1156 = vmatpush.msra.mxu0 %v1121
        %1157 = vmatpush.msra.mxu0 %v1120
        %1158 = vmatpush.msra.mxu0 %v1119
        %1159 = vmatmul.f32.gmra.mxu0 %v1131
        %v1160 = vpop.f32.mrf.mxu0
        %v1161 = vadd.f32 0.0, %v1160
        %1162 = vmatmul.f32.gmra.mxu0 %v1134
        %v1163 = vpop.f32.mrf.mxu0
        %v1164 = vadd.f32 0.0, %v1163
        %1165 = vmatmul.f32.gmra.mxu0 %v1137
        %v1166 = vpop.f32.mrf.mxu0
        %v1167 = vadd.f32 0.0, %v1166
        %1168 = vdwg.mxu0
        %s1169 = scalar_lea.vmem %s4, 24
        %v1170 = vld [vmem:[%s1169] sm:$0xff]
        %v1171 = vld [vmem:[%s1169 + $0x8] sm:$0xff]
        %v1172 = vld [vmem:[%s1169 + $0x10] sm:$0x3]
        %v1174 = vsel %vm1129, %v1170, 0
        %v1177 = vsel %vm1129, %v1171, 0
        %v1180 = vsel %vm1129, %v1172, 0
        %1182 = vmatpush.msra.mxu0 0.0
        %1183 = vmatpush.msra.mxu0 0.0
        %1184 = vmatpush.msra.mxu0 0.0
        %1185 = vmatpush.msra.mxu0 0.0
        %1186 = vmatpush.msra.mxu0 0.0
        %1187 = vmatpush.msra.mxu0 0.0
        %1188 = vmatpush.msra.mxu0 0.0
        %1189 = vmatpush.msra.mxu0 0.0
        %1190 = vmatpush.msra.mxu0 0.0
        %1191 = vmatpush.msra.mxu0 %v1141
        %1192 = vmatpush.msra.mxu0 %v1124
        %1193 = vmatpush.msra.mxu0 %v1123
        %1194 = vmatpush.msra.mxu0 %v1122
        %1195 = vmatpush.msra.mxu0 %v1121
        %1196 = vmatpush.msra.mxu0 %v1120
        %1197 = vmatpush.msra.mxu0 %v1119
        %1198 = vmatmul.f32.gmra.mxu0 %v1174
        %v1199 = vpop.f32.mrf.mxu0
        %v1200 = vadd.f32 0.0, %v1199
        %1201 = vmatmul.f32.gmra.mxu0 %v1177
        %v1202 = vpop.f32.mrf.mxu0
        %v1203 = vadd.f32 0.0, %v1202
        %1204 = vmatmul.f32.gmra.mxu0 %v1180
        %v1205 = vpop.f32.mrf.mxu0
        %v1206 = vadd.f32 0.0, %v1205
        %1207 = vdwg.mxu0
        %v1208 = vmax.f32 %v1161, %v1200
        %v1209 = vmax.f32 %v1164, %v1203
        %v1210 = vmax.f32 %v1167, %v1206
        %s1211 = scalar_lea.vmem %s4, 48
        %v1212 = vld [vmem:[%s1211] sm:$0xff]
        %v1213 = vld [vmem:[%s1211 + $0x8] sm:$0xff]
        %v1214 = vld [vmem:[%s1211 + $0x10] sm:$0x3]
        %v1216 = vsel %vm1129, %v1212, 0
        %v1219 = vsel %vm1129, %v1213, 0
        %v1222 = vsel %vm1129, %v1214, 0
        %1224 = vmatpush.msra.mxu0 0.0
        %1225 = vmatpush.msra.mxu0 0.0
        %1226 = vmatpush.msra.mxu0 0.0
        %1227 = vmatpush.msra.mxu0 0.0
        %1228 = vmatpush.msra.mxu0 0.0
        %1229 = vmatpush.msra.mxu0 0.0
        %1230 = vmatpush.msra.mxu0 0.0
        %1231 = vmatpush.msra.mxu0 0.0
        %1232 = vmatpush.msra.mxu0 0.0
        %1233 = vmatpush.msra.mxu0 %v1141
        %1234 = vmatpush.msra.mxu0 %v1124
        %1235 = vmatpush.msra.mxu0 %v1123
        %1236 = vmatpush.msra.mxu0 %v1122
        %1237 = vmatpush.msra.mxu0 %v1121
        %1238 = vmatpush.msra.mxu0 %v1120
        %1239 = vmatpush.msra.mxu0 %v1119
        %1240 = vmatmul.f32.gmra.mxu0 %v1216
        %v1241 = vpop.f32.mrf.mxu0
        %v1242 = vadd.f32 0.0, %v1241
        %1243 = vmatmul.f32.gmra.mxu0 %v1219
        %v1244 = vpop.f32.mrf.mxu0
        %v1245 = vadd.f32 0.0, %v1244
        %1246 = vmatmul.f32.gmra.mxu0 %v1222
        %v1247 = vpop.f32.mrf.mxu0
        %v1248 = vadd.f32 0.0, %v1247
        %1249 = vdwg.mxu0
        %v1250 = vmax.f32 %v1208, %v1242
        %v1251 = vmax.f32 %v1209, %v1245
        %v1252 = vmax.f32 %v1210, %v1248
        %v1256 = vrot.slane %v1250, 7
        %v1257 = vrot.slane %v1251, 7
        %v1258 = vsel %vm371, %v1256, %v1257
        %v1259 = vrot.slane %v1252, 7
        %v1260 = vsel %vm371, %v1257, %v1259
        %v1264 = vsel %vm371, 0.0, %v1256
        %v1265 = vrot.slane %v1250, 1
        %v1266 = vrot.slane %v1251, 1
        %v1267 = vsel %vm393, %v1265, %v1266
        %v1268 = vrot.slane %v1252, 1
        %v1269 = vsel %vm393, %v1266, %v1268
        %v1273 = vsel %vm371, %v1268, 0.0
        %s1274 = scalar_lea.vmem [#allocation3], 1152
        %v1275 = vld [vmem:[%s1274] sm:$0xff]
        %v1276 = vld [vmem:[%s1274 + $0x8] sm:$0xff]
        %v1277 = vld [vmem:[%s1274 + $0x10] sm:$0xff]
        %v1278 = vld [vmem:[%s1274 + $0x18] sm:$0xff]
        %v1279 = vld [vmem:[%s1274 + $0x20] sm:$0xff]
        %v1280 = vld [vmem:[%s1274 + $0x28] sm:$0xff]
        %v1281 = vld [vmem:[%s1274 + $0x30] sm:$0xff]
        %v1282 = vld [vmem:[%s1274 + $0x38] sm:$0xff]
        %v1283 = vld [vmem:[%s1274 + $0x40] sm:$0xff]
        %v1284 = vld [vmem:[%s1274 + $0x48] sm:$0xff]
        %v1285 = vld [vmem:[%s1274 + $0x50] sm:$0xff]
        %v1286 = vld [vmem:[%s1274 + $0x58] sm:$0xff]
        %v1287 = vld [vmem:[%s1274 + $0x60] sm:$0xff]
        %v1288 = vld [vmem:[%s1274 + $0x68] sm:$0xff]
        %v1289 = vld [vmem:[%s1274 + $0x70] sm:$0xff]
        %v1290 = vld [vmem:[%s1274 + $0x78] sm:$0xff]
        %v1291 = vld [vmem:[%s1274 + $0x80] sm:$0xff]
        %v1292 = vld [vmem:[%s1274 + $0x88] sm:$0xff]
        %v1293 = vld [vmem:[%s1274 + $0x90] sm:$0xff]
        %v1294 = vld [vmem:[%s1274 + $0x98] sm:$0xff]
        %v1295 = vld [vmem:[%s1274 + $0xa0] sm:$0xff]
        %v1296 = vld [vmem:[%s1274 + $0xa8] sm:$0xff]
        %v1297 = vld [vmem:[%s1274 + $0xb0] sm:$0xff]
        %v1298 = vld [vmem:[%s1274 + $0xb8] sm:$0xff]
        %v1299 = vld [vmem:[%s1274 + $0xc0] sm:$0xff]
        %v1300 = vld [vmem:[%s1274 + $0xc8] sm:$0xff]
        %v1301 = vld [vmem:[%s1274 + $0xd0] sm:$0xff]
        %v1302 = vld [vmem:[%s1274 + $0xd8] sm:$0xff]
        %v1303 = vld [vmem:[%s1274 + $0xe0] sm:$0xff]
        %v1304 = vld [vmem:[%s1274 + $0xe8] sm:$0xff]
        %v1305 = vld [vmem:[%s1274 + $0xf0] sm:$0xff]
        %v1306 = vld [vmem:[%s1274 + $0xf8] sm:$0xff]
        %v1307 = vld [vmem:[%s1274 + $0x100] sm:$0xff]
        %v1308 = vld [vmem:[%s1274 + $0x108] sm:$0xff]
        %v1309 = vld [vmem:[%s1274 + $0x110] sm:$0xff]
        %v1310 = vld [vmem:[%s1274 + $0x118] sm:$0xff]
        %v1311 = vld [vmem:[%s1274 + $0x120] sm:$0xff]
        %v1312 = vld [vmem:[%s1274 + $0x128] sm:$0xff]
        %v1313 = vld [vmem:[%s1274 + $0x130] sm:$0xff]
        %v1314 = vld [vmem:[%s1274 + $0x138] sm:$0xff]
        %v1315 = vld [vmem:[%s1274 + $0x140] sm:$0xff]
        %v1316 = vld [vmem:[%s1274 + $0x148] sm:$0xff]
        %v1317 = vld [vmem:[%s1274 + $0x150] sm:$0xff]
        %v1318 = vld [vmem:[%s1274 + $0x158] sm:$0xff]
        %v1319 = vld [vmem:[%s1274 + $0x160] sm:$0xff]
        %v1320 = vld [vmem:[%s1274 + $0x168] sm:$0xff]
        %v1321 = vld [vmem:[%s1274 + $0x170] sm:$0xff]
        %v1322 = vld [vmem:[%s1274 + $0x178] sm:$0xff]
        %1323 = vmatpush.msra.mxu0 %v1290
        %1324 = vmatpush.msra.mxu0 %v1289
        %1325 = vmatpush.msra.mxu0 %v1288
        %1326 = vmatpush.msra.mxu0 %v1287
        %1327 = vmatpush.msra.mxu0 %v1286
        %1328 = vmatpush.msra.mxu0 %v1285
        %1329 = vmatpush.msra.mxu0 %v1284
        %1330 = vmatpush.msra.mxu0 %v1283
        %1331 = vmatpush.msra.mxu0 %v1282
        %1332 = vmatpush.msra.mxu0 %v1281
        %1333 = vmatpush.msra.mxu0 %v1280
        %1334 = vmatpush.msra.mxu0 %v1279
        %1335 = vmatpush.msra.mxu0 %v1278
        %1336 = vmatpush.msra.mxu0 %v1277
        %1337 = vmatpush.msra.mxu0 %v1276
        %1338 = vmatpush.msra.mxu0 %v1275
        %1339 = vmatmul.f32.gmra.mxu0 %v1264
        %v1340 = vpop.f32.mrf.mxu0
        %v1341 = vadd.f32 0.0, %v1340
        %1342 = vmatmul.f32.gmra.mxu0 %v1258
        %v1343 = vpop.f32.mrf.mxu0
        %v1344 = vadd.f32 0.0, %v1343
        %1345 = vmatmul.f32.gmra.mxu0 %v1260
        %v1346 = vpop.f32.mrf.mxu0
        %v1347 = vadd.f32 0.0, %v1346
        %1348 = vdwg.mxu0
        %1349 = vmatpush.msra.mxu0 %v1306
        %1350 = vmatpush.msra.mxu0 %v1305
        %1351 = vmatpush.msra.mxu0 %v1304
        %1352 = vmatpush.msra.mxu0 %v1303
        %1353 = vmatpush.msra.mxu0 %v1302
        %1354 = vmatpush.msra.mxu0 %v1301
        %1355 = vmatpush.msra.mxu0 %v1300
        %1356 = vmatpush.msra.mxu0 %v1299
        %1357 = vmatpush.msra.mxu0 %v1298
        %1358 = vmatpush.msra.mxu0 %v1297
        %1359 = vmatpush.msra.mxu0 %v1296
        %1360 = vmatpush.msra.mxu0 %v1295
        %1361 = vmatpush.msra.mxu0 %v1294
        %1362 = vmatpush.msra.mxu0 %v1293
        %1363 = vmatpush.msra.mxu0 %v1292
        %1364 = vmatpush.msra.mxu0 %v1291
        %1365 = vmatmul.f32.gmra.mxu0 %v1250
        %v1366 = vpop.f32.mrf.mxu0
        %v1367 = vadd.f32 %v1341, %v1366
        %1368 = vmatmul.f32.gmra.mxu0 %v1251
        %v1369 = vpop.f32.mrf.mxu0
        %v1370 = vadd.f32 %v1344, %v1369
        %1371 = vmatmul.f32.gmra.mxu0 %v1252
        %v1372 = vpop.f32.mrf.mxu0
        %v1373 = vadd.f32 %v1347, %v1372
        %1374 = vdwg.mxu0
        %1375 = vmatpush.msra.mxu0 %v1322
        %1376 = vmatpush.msra.mxu0 %v1321
        %1377 = vmatpush.msra.mxu0 %v1320
        %1378 = vmatpush.msra.mxu0 %v1319
        %1379 = vmatpush.msra.mxu0 %v1318
        %1380 = vmatpush.msra.mxu0 %v1317
        %1381 = vmatpush.msra.mxu0 %v1316
        %1382 = vmatpush.msra.mxu0 %v1315
        %1383 = vmatpush.msra.mxu0 %v1314
        %1384 = vmatpush.msra.mxu0 %v1313
        %1385 = vmatpush.msra.mxu0 %v1312
        %1386 = vmatpush.msra.mxu0 %v1311
        %1387 = vmatpush.msra.mxu0 %v1310
        %1388 = vmatpush.msra.mxu0 %v1309
        %1389 = vmatpush.msra.mxu0 %v1308
        %1390 = vmatpush.msra.mxu0 %v1307
        %1391 = vmatmul.f32.gmra.mxu0 %v1267
        %v1392 = vpop.f32.mrf.mxu0
        %v1393 = vadd.f32 %v1367, %v1392
        %1394 = vmatmul.f32.gmra.mxu0 %v1269
        %v1395 = vpop.f32.mrf.mxu0
        %v1396 = vadd.f32 %v1370, %v1395
        %1397 = vmatmul.f32.gmra.mxu0 %v1273
        %v1398 = vpop.f32.mrf.mxu0
        %v1399 = vadd.f32 %v1373, %v1398
        %1400 = vdwg.mxu0
        %v1401 = vld [vmem:[%s2 + $0x3] sm:$0x1]
        %v1402 = vperm.slane %v1401, 0
        %v1403 = vmul.f32 %v1393, %v1402
        %v1404 = vmul.f32 %v1396, %v1402
        %v1405 = vmul.f32 %v1399, %v1402
        %v1406 = vld [vmem:[%s3 + $0x3] sm:$0x1]
        %v1407 = vperm.slane %v1406, 0
        %v1408 = vadd.f32 %v1403, %v1407
        %v1409 = vadd.f32 %v1404, %v1407
        %v1410 = vadd.f32 %v1405, %v1407
        %v1411 = vmax.f32 %v1408, 0.0
        %v1412 = vmax.f32 %v1409, 0.0
        %v1413 = vmax.f32 %v1410, 0.0
        %vm1414 = vcmp.le.s32.totalorder %v603, 16
        %vm1415 = vcmp.le.s32.totalorder %v604, 16
        %vm1416 = vcmp.le.s32.totalorder %v605, 16
        %vm1417 = vmand %vm610, %vm1414
        %vm1418 = vmand %vm611, %vm1415
        %vm1419 = vmand %vm612, %vm1416
        %v1420 = vsel %vm1417, %v1411, 0.0
        %v1421 = vsel %vm1418, %v1412, 0.0
        %v1422 = vsel %vm1419, %v1413, 0.0
        %v1423 = vld [vmem:[%s5] sm:$0xff]
        %vm1424 = vcmask 146432
        %v1426 = vsel %vm1424, %v1423, 0
        %v1429 = vsel %vm1139, %v1422, 0
        %1431 = vmatpush.msra.mxu0 0.0
        %1432 = vmatpush.msra.mxu0 0.0
        %1433 = vmatpush.msra.mxu0 0.0
        %1434 = vmatpush.msra.mxu0 0.0
        %1435 = vmatpush.msra.mxu0 0.0
        %1436 = vmatpush.msra.mxu0 0.0
        %1437 = vmatpush.msra.mxu0 0.0
        %1438 = vmatpush.msra.mxu0 0.0
        %1439 = vmatpush.msra.mxu0 0.0
        %1440 = vmatpush.msra.mxu0 0.0
        %1441 = vmatpush.msra.mxu0 0.0
        %1442 = vmatpush.msra.mxu0 0.0
        %1443 = vmatpush.msra.mxu0 0.0
        %1444 = vmatpush.msra.mxu0 %v1429
        %1445 = vmatpush.msra.mxu0 %v1421
        %1446 = vmatpush.msra.mxu0 %v1420
        %1447 = vmatmul.f32.gmra.mxu0 %v1426
        %v1448 = vpop.f32.mrf.mxu0
        %v1449 = vadd.f32 0.0, %v1448
        %1450 = vdwg.mxu0
        %s1451 = scalar_lea.vmem %s5, 8
        %v1452 = vld [vmem:[%s1451] sm:$0xff]
        %v1454 = vsel %vm1424, %v1452, 0
        %1456 = vmatpush.msra.mxu0 0.0
        %1457 = vmatpush.msra.mxu0 0.0
        %1458 = vmatpush.msra.mxu0 0.0
        %1459 = vmatpush.msra.mxu0 0.0
        %1460 = vmatpush.msra.mxu0 0.0
        %1461 = vmatpush.msra.mxu0 0.0
        %1462 = vmatpush.msra.mxu0 0.0
        %1463 = vmatpush.msra.mxu0 0.0
        %1464 = vmatpush.msra.mxu0 0.0
        %1465 = vmatpush.msra.mxu0 0.0
        %1466 = vmatpush.msra.mxu0 0.0
        %1467 = vmatpush.msra.mxu0 0.0
        %1468 = vmatpush.msra.mxu0 0.0
        %1469 = vmatpush.msra.mxu0 %v1429
        %1470 = vmatpush.msra.mxu0 %v1421
        %1471 = vmatpush.msra.mxu0 %v1420
        %1472 = vmatmul.f32.gmra.mxu0 %v1454
        %v1473 = vpop.f32.mrf.mxu0
        %v1474 = vadd.f32 0.0, %v1473
        %1475 = vdwg.mxu0
        %v1476 = vmax.f32 %v1449, %v1474
        %s1477 = scalar_lea.vmem %s5, 16
        %v1478 = vld [vmem:[%s1477] sm:$0xff]
        %v1480 = vsel %vm1424, %v1478, 0
        %1482 = vmatpush.msra.mxu0 0.0
        %1483 = vmatpush.msra.mxu0 0.0
        %1484 = vmatpush.msra.mxu0 0.0
        %1485 = vmatpush.msra.mxu0 0.0
        %1486 = vmatpush.msra.mxu0 0.0
        %1487 = vmatpush.msra.mxu0 0.0
        %1488 = vmatpush.msra.mxu0 0.0
        %1489 = vmatpush.msra.mxu0 0.0
        %1490 = vmatpush.msra.mxu0 0.0
        %1491 = vmatpush.msra.mxu0 0.0
        %1492 = vmatpush.msra.mxu0 0.0
        %1493 = vmatpush.msra.mxu0 0.0
        %1494 = vmatpush.msra.mxu0 0.0
        %1495 = vmatpush.msra.mxu0 %v1429
        %1496 = vmatpush.msra.mxu0 %v1421
        %1497 = vmatpush.msra.mxu0 %v1420
        %1498 = vmatmul.f32.gmra.mxu0 %v1480
        %v1499 = vpop.f32.mrf.mxu0
        %v1500 = vadd.f32 0.0, %v1499
        %1501 = vdwg.mxu0
        %v1502 = vmax.f32 %v1476, %v1500
        %v1504 = vrot.slane %v1502, 7
        %v1506 = vsel %vm371, 0.0, %v1504
        %v1507 = vrot.slane %v1502, 1
        %v1509 = vsel %vm393, %v1507, 0.0
        %s1510 = scalar_lea.vmem [#allocation3], 1536
        %v1511 = vld [vmem:[%s1510] sm:$0xff]
        %v1512 = vld [vmem:[%s1510 + $0x8] sm:$0xff]
        %v1513 = vld [vmem:[%s1510 + $0x10] sm:$0xff]
        %v1514 = vld [vmem:[%s1510 + $0x18] sm:$0xff]
        %v1515 = vld [vmem:[%s1510 + $0x20] sm:$0xff]
        %v1516 = vld [vmem:[%s1510 + $0x28] sm:$0xff]
        %v1517 = vld [vmem:[%s1510 + $0x30] sm:$0xff]
        %v1518 = vld [vmem:[%s1510 + $0x38] sm:$0xff]
        %v1519 = vld [vmem:[%s1510 + $0x40] sm:$0xff]
        %v1520 = vld [vmem:[%s1510 + $0x48] sm:$0xff]
        %v1521 = vld [vmem:[%s1510 + $0x50] sm:$0xff]
        %v1522 = vld [vmem:[%s1510 + $0x58] sm:$0xff]
        %v1523 = vld [vmem:[%s1510 + $0x60] sm:$0xff]
        %v1524 = vld [vmem:[%s1510 + $0x68] sm:$0xff]
        %v1525 = vld [vmem:[%s1510 + $0x70] sm:$0xff]
        %v1526 = vld [vmem:[%s1510 + $0x78] sm:$0xff]
        %v1527 = vld [vmem:[%s1510 + $0x80] sm:$0xff]
        %v1528 = vld [vmem:[%s1510 + $0x88] sm:$0xff]
        %v1529 = vld [vmem:[%s1510 + $0x90] sm:$0xff]
        %v1530 = vld [vmem:[%s1510 + $0x98] sm:$0xff]
        %v1531 = vld [vmem:[%s1510 + $0xa0] sm:$0xff]
        %v1532 = vld [vmem:[%s1510 + $0xa8] sm:$0xff]
        %v1533 = vld [vmem:[%s1510 + $0xb0] sm:$0xff]
        %v1534 = vld [vmem:[%s1510 + $0xb8] sm:$0xff]
        %v1535 = vld [vmem:[%s1510 + $0xc0] sm:$0xff]
        %v1536 = vld [vmem:[%s1510 + $0xc8] sm:$0xff]
        %v1537 = vld [vmem:[%s1510 + $0xd0] sm:$0xff]
        %v1538 = vld [vmem:[%s1510 + $0xd8] sm:$0xff]
        %v1539 = vld [vmem:[%s1510 + $0xe0] sm:$0xff]
        %v1540 = vld [vmem:[%s1510 + $0xe8] sm:$0xff]
        %v1541 = vld [vmem:[%s1510 + $0xf0] sm:$0xff]
        %v1542 = vld [vmem:[%s1510 + $0xf8] sm:$0xff]
        %v1543 = vld [vmem:[%s1510 + $0x100] sm:$0xff]
        %v1544 = vld [vmem:[%s1510 + $0x108] sm:$0xff]
        %v1545 = vld [vmem:[%s1510 + $0x110] sm:$0xff]
        %v1546 = vld [vmem:[%s1510 + $0x118] sm:$0xff]
        %v1547 = vld [vmem:[%s1510 + $0x120] sm:$0xff]
        %v1548 = vld [vmem:[%s1510 + $0x128] sm:$0xff]
        %v1549 = vld [vmem:[%s1510 + $0x130] sm:$0xff]
        %v1550 = vld [vmem:[%s1510 + $0x138] sm:$0xff]
        %v1551 = vld [vmem:[%s1510 + $0x140] sm:$0xff]
        %v1552 = vld [vmem:[%s1510 + $0x148] sm:$0xff]
        %v1553 = vld [vmem:[%s1510 + $0x150] sm:$0xff]
        %v1554 = vld [vmem:[%s1510 + $0x158] sm:$0xff]
        %v1555 = vld [vmem:[%s1510 + $0x160] sm:$0xff]
        %v1556 = vld [vmem:[%s1510 + $0x168] sm:$0xff]
        %v1557 = vld [vmem:[%s1510 + $0x170] sm:$0xff]
        %v1558 = vld [vmem:[%s1510 + $0x178] sm:$0xff]
        %1559 = vmatpush.msra.mxu0 %v1526
        %1560 = vmatpush.msra.mxu0 %v1525
        %1561 = vmatpush.msra.mxu0 %v1524
        %1562 = vmatpush.msra.mxu0 %v1523
        %1563 = vmatpush.msra.mxu0 %v1522
        %1564 = vmatpush.msra.mxu0 %v1521
        %1565 = vmatpush.msra.mxu0 %v1520
        %1566 = vmatpush.msra.mxu0 %v1519
        %1567 = vmatpush.msra.mxu0 %v1518
        %1568 = vmatpush.msra.mxu0 %v1517
        %1569 = vmatpush.msra.mxu0 %v1516
        %1570 = vmatpush.msra.mxu0 %v1515
        %1571 = vmatpush.msra.mxu0 %v1514
        %1572 = vmatpush.msra.mxu0 %v1513
        %1573 = vmatpush.msra.mxu0 %v1512
        %1574 = vmatpush.msra.mxu0 %v1511
        %1575 = vmatmul.f32.gmra.mxu0 %v1506
        %v1576 = vpop.f32.mrf.mxu0
        %v1577 = vadd.f32 0.0, %v1576
        %1578 = vdwg.mxu0
        %1579 = vmatpush.msra.mxu0 %v1542
        %1580 = vmatpush.msra.mxu0 %v1541
        %1581 = vmatpush.msra.mxu0 %v1540
        %1582 = vmatpush.msra.mxu0 %v1539
        %1583 = vmatpush.msra.mxu0 %v1538
        %1584 = vmatpush.msra.mxu0 %v1537
        %1585 = vmatpush.msra.mxu0 %v1536
        %1586 = vmatpush.msra.mxu0 %v1535
        %1587 = vmatpush.msra.mxu0 %v1534
        %1588 = vmatpush.msra.mxu0 %v1533
        %1589 = vmatpush.msra.mxu0 %v1532
        %1590 = vmatpush.msra.mxu0 %v1531
        %1591 = vmatpush.msra.mxu0 %v1530
        %1592 = vmatpush.msra.mxu0 %v1529
        %1593 = vmatpush.msra.mxu0 %v1528
        %1594 = vmatpush.msra.mxu0 %v1527
        %1595 = vmatmul.f32.gmra.mxu0 %v1502
        %v1596 = vpop.f32.mrf.mxu0
        %v1597 = vadd.f32 %v1577, %v1596
        %1598 = vdwg.mxu0
        %1599 = vmatpush.msra.mxu0 %v1558
        %1600 = vmatpush.msra.mxu0 %v1557
        %1601 = vmatpush.msra.mxu0 %v1556
        %1602 = vmatpush.msra.mxu0 %v1555
        %1603 = vmatpush.msra.mxu0 %v1554
        %1604 = vmatpush.msra.mxu0 %v1553
        %1605 = vmatpush.msra.mxu0 %v1552
        %1606 = vmatpush.msra.mxu0 %v1551
        %1607 = vmatpush.msra.mxu0 %v1550
        %1608 = vmatpush.msra.mxu0 %v1549
        %1609 = vmatpush.msra.mxu0 %v1548
        %1610 = vmatpush.msra.mxu0 %v1547
        %1611 = vmatpush.msra.mxu0 %v1546
        %1612 = vmatpush.msra.mxu0 %v1545
        %1613 = vmatpush.msra.mxu0 %v1544
        %1614 = vmatpush.msra.mxu0 %v1543
        %1615 = vmatmul.f32.gmra.mxu0 %v1509
        %v1616 = vpop.f32.mrf.mxu0
        %v1617 = vadd.f32 %v1597, %v1616
        %1618 = vdwg.mxu0
        %v1619 = vld [vmem:[%s2 + $0x4] sm:$0x1]
        %v1620 = vperm.slane %v1619, 0
        %v1621 = vmul.f32 %v1617, %v1620
        %v1622 = vld [vmem:[%s3 + $0x4] sm:$0x1]
        %v1623 = vperm.slane %v1622, 0
        %v1624 = vadd.f32 %v1621, %v1623
        %v1625 = vmax.f32 %v1624, 0.0
        %vm1626 = vcmp.le.s32.totalorder %v603, 6
        %vm1627 = vmand %vm610, %vm1626
        %v1628 = vsel %vm1627, %v1625, 0.0
        %v1629 = vrot.slane %v1628, 4
        %v1630 = vadd.f32 %v1628, %v1629
        %v1631 = vrot.slane %v1630, 2
        %v1632 = vadd.f32 %v1630, %v1631
        %v1633 = vrot.slane %v1632, 1
        %v1634 = vadd.f32 %v1632, %v1633
        %v1635 = vmul.f32 %v1634, 0.16666667
        %v1636 = vld [vmem:[#allocation6] sm:$0xff]
        %v1637 = vld [vmem:[#allocation6 + $0x8] sm:$0xff]
        %v1638 = vld [vmem:[#allocation6 + $0x10] sm:$0xff]
        %v1639 = vld [vmem:[#allocation6 + $0x18] sm:$0xff]
        %v1640 = vld [vmem:[#allocation6 + $0x20] sm:$0xff]
        %v1641 = vld [vmem:[#allocation6 + $0x28] sm:$0xff]
        %v1642 = vld [vmem:[#allocation6 + $0x30] sm:$0xff]
        %v1643 = vld [vmem:[#allocation6 + $0x38] sm:$0xff]
        %v1644 = vld [vmem:[#allocation6 + $0x40] sm:$0xff]
        %v1645 = vld [vmem:[#allocation6 + $0x48] sm:$0xff]
        %v1646 = vld [vmem:[#allocation6 + $0x50] sm:$0xff]
        %v1647 = vld [vmem:[#allocation6 + $0x58] sm:$0xff]
        %v1648 = vld [vmem:[#allocation6 + $0x60] sm:$0xff]
        %v1649 = vld [vmem:[#allocation6 + $0x68] sm:$0xff]
        %v1650 = vld [vmem:[#allocation6 + $0x70] sm:$0xff]
        %v1651 = vld [vmem:[#allocation6 + $0x78] sm:$0xff]
        %v1652 = vld [vmem:[%s7] sm:$0x1]
        %1653 = vmatpush.msra.mxu0 %v1651
        %1654 = vmatpush.msra.mxu0 %v1650
        %1655 = vmatpush.msra.mxu0 %v1649
        %1656 = vmatpush.msra.mxu0 %v1648
        %1657 = vmatpush.msra.mxu0 %v1647
        %1658 = vmatpush.msra.mxu0 %v1646
        %1659 = vmatpush.msra.mxu0 %v1645
        %1660 = vmatpush.msra.mxu0 %v1644
        %1661 = vmatpush.msra.mxu0 %v1643
        %1662 = vmatpush.msra.mxu0 %v1642
        %1663 = vmatpush.msra.mxu0 %v1641
        %1664 = vmatpush.msra.mxu0 %v1640
        %1665 = vmatpush.msra.mxu0 %v1639
        %1666 = vmatpush.msra.mxu0 %v1638
        %1667 = vmatpush.msra.mxu0 %v1637
        %1668 = vmatpush.msra.mxu0 %v1636
        %1669 = vmatmul.f32.gmra.mxu0 %v1635
        %v1670 = vpop.f32.mrf.mxu0
        %v1671 = vadd.f32 %v1652, %v1670
        %1672 = vdwg.mxu0
        %1673 = vst [vmem:[%s331] sm:$0x1] %v1671
        %s1674 = sand.u32 %s205, 1
        %s1675 = scalar_lea.sflag [#allocation5], %s1674
        %s1676 = sand.u32 %s205, 1
        %s1677 = scalar_lea.vmem [#allocation8], %s1676
        // Predicated region
        $region61: #{ticnn_at_forward.1} parent=51 // pred_check
          %p1678 = pneg %p215
        $region62: #{ticnn_at_forward.1} parent=51 // pred_check_branch
          %1680 = sbr.rel (%p1678) target = $region64
        $region63: #{ticnn_at_forward.1} parent=51 // pred_region
          %1682 = vsyncadd %s1675, 0
          %s1683 = scalar_lea.hbm %s8, %s24
          %s1685 = sshll.u32 %s1677, 4
          %s1686 = int_to_ptr.vmem [resolvable:$true] %s1685
          %s1687 = sshll.u32 %s1683, 4
          %s1688 = int_to_ptr.hbm [resolvable:$true] %s1687
          %1690 = dma.vmem_to_hbm [thread:$0]  %s1686, 16, %s1688, %s1675
        $region64: #{ticnn_at_forward.1} parent=51 // pred_fallthru
          _
      $region52: #{ticnn_at_forward.1} parent=5 // pred_fallthru
        _
      %p1691 = scmp.le.s32.totalorder 2, %s19
      // Predicated region
      $region65: #{ticnn_at_forward.1} parent=5 // pred_check
        %p1692 = pneg %p1691
      $region66: #{ticnn_at_forward.1} parent=5 // pred_check_branch
        %1694 = sbr.rel (%p1692) target = $region68
      $region67: #{ticnn_at_forward.1} parent=5 // pred_region
        %s1695 = ssub.s32 %s19, 2
        // Predicated region
        $region69: #{ticnn_at_forward.1} parent=67 // pred_check
          %p1696 = pneg %p221
        $region70: #{ticnn_at_forward.1} parent=67 // pred_check_branch
          %1698 = sbr.rel (%p1696) target = $region72
        $region71: #{ticnn_at_forward.1} parent=67 // pred_region
          %s1699 = sand.u32 %s206, 1
          %s1700 = scalar_lea.sflag [#allocation5], %s1699
          %s1701 = sand.u32 %s206, 1
          %s1702 = scalar_lea.vmem [#allocation8], %s1701
          %1704 = dma.done %s1700, 16
        $region72: #{ticnn_at_forward.1} parent=67 // pred_fallthru
          _
      $region68: #{ticnn_at_forward.1} parent=5 // pred_fallthru
        _
    $region6: #{ticnn_at_forward.1} parent=1 // loop_footer
      %s23 = sadd.s32 1, %s19
    $region7: #{ticnn_at_forward.1} parent=1 // loop_footer_branch
      %18 = sbr.rel target = $region3
    $region8: #{ticnn_at_forward.1} parent=1 // loop_exit
      _
    %1705 = vsyncpa [#allocation4], 1
    %s1706 = scalar_lea.sflag [#allocation4], 1
    %1707 = vsyncpa %s1706, 1
    %1708 = vsyncpa [#allocation7], 1
    %1709 = vsyncpa [#allocation5], 1
    %s1710 = scalar_lea.sflag [#allocation5], 1
    %1711 = vsyncpa %s1710, 1

</llo_original>
